<compile_context>
chip_gen: v7x
topology: tpu7x:2x2x1
jax: 0.10.0
libtpu: 0.0.40
codegen_flags: <defaults>
</compile_context>

<pallas_src>
import jax
import jax.numpy as jnp
from jax.experimental import pallas as pl
from jax.experimental.pallas import tpu as pltpu

LANE = 128


def _round_up(x, m):
    return ((x + m - 1) // m) * m


def _vmem_limit_bytes():
    """Generation-aware VMEM budget: ~3/4 of physical (≈96 MiB v5e/v6e, ≈48 MiB v7x)."""
    cap = None
    try:
        cap = getattr(pltpu.get_tpu_info(), "vmem_capacity_bytes", None)
    except Exception:
        cap = None
    if not cap:
        cap = 64 * 1024 * 1024  # conservative fallback (v7x per-TC VMEM)
    return int(min((cap * 3) // 4, 100 * 1024 * 1024))


def _pick_row_tile(n_padded):
    """Largest row tile in {1024..128} dividing n_padded while keeping >= 2 row tiles,
    so the "parallel" grid axis can feed both TensorCores on v7x."""
    for cand in (1024, 512, 256, 128):
        if n_padded % cand == 0 and n_padded // cand >= 2:
            return cand
    return n_padded  # tiny graph: single row tile


def _pick_agg_tiles(n_padded, fmax_p, vmem_budget):
    """Tile sizes (tm, tk) for the aggregation matmul (n_padded is a multiple of 128)."""
    tm = _pick_row_tile(n_padded)
    tk = n_padded
    for cand in (2048, 1024, 512, 256, 128):
        if n_padded % cand == 0:
            tk = cand
            break

    def footprint(tm_, tk_):
        a = 2 * tm_ * tk_ * 2            # double-buffered A tiles (bf16)
        h = 2 * tk_ * fmax_p * 2         # double-buffered H K-tiles (bf16)
        s = 2 * tm_ * fmax_p * 4         # double-buffered S row tiles (f32)
        outs = 2 * tm_ * fmax_p * 6      # H_next (bf16) + S_next (f32) output tiles
        acc = tm_ * fmax_p * 4           # accumulator scratch
        w = 2 * 2 * fmax_p * fmax_p * 2  # resident next-layer weights
        return a + h + s + outs + acc + w

    while tk > LANE and tk % (2 * LANE) == 0 and footprint(tm, tk) > vmem_budget // 2:
        tk //= 2
    while tm > LANE and tm % (2 * LANE) == 0 and footprint(tm, tk) > vmem_budget // 2:
        tm //= 2
    return tm, tk


# ---------------------------------------------------------------------------
# Kernel 1: layer-0 feature transform  H = X @ W_l^T,  S = X @ W_r^T + b
# ---------------------------------------------------------------------------
def _transform_kernel(x_ref, wl_ref, wr_ref, b_ref, h_ref, s_ref):
    x = x_ref[...].astype(jnp.bfloat16)
    h_ref[...] = jnp.dot(x, wl_ref[...],
                         preferred_element_type=jnp.float32).astype(jnp.bfloat16)
    s_ref[...] = jnp.dot(x, wr_ref[...], preferred_element_type=jnp.float32) + b_ref[...]


def transform_pallas(x, wl_t, wr_t, b, vmem_limit):
    """x:[Np,Fin_p] f32, wl_t/wr_t:[Fin_p,Fout_p] bf16, b:[1,Fout_p] f32."""
    n, fin = x.shape
    fout = wl_t.shape[1]
    # Transform is a tiny mem-bound pass over X: use a big row tile of its own.
    tm = _pick_row_tile(n)

    def footprint(t):
        return 2 * t * fin * 4 + 2 * t * fout * 6 + 2 * 2 * fin * fout * 2 + 2 * fout * 4

    while tm > LANE and tm % (2 * LANE) == 0 and footprint(tm) > vmem_limit // 2:
        tm //= 2

    cost = pl.CostEstimate(
        flops=4 * n * fin * fout,
        transcendentals=0,
        bytes_accessed=int(x.size * 4 + wl_t.size * 2 + wr_t.size * 2 + n * fout * 6),
    )
    return pl.pallas_call(
        _transform_kernel,
        out_shape=(
            jax.ShapeDtypeStruct((n, fout), jnp.bfloat16),  # H0 (bf16 activations)
            jax.ShapeDtypeStruct((n, fout), jnp.float32),   # S0 (self term + bias)
        ),
        grid=(n // tm,),
        in_specs=[
            pl.BlockSpec((tm, fin), lambda i: (i, 0)),      # X row tile
            pl.BlockSpec((fin, fout), lambda i: (0, 0)),    # W_l^T (resident)
            pl.BlockSpec((fin, fout), lambda i: (0, 0)),    # W_r^T (resident)
            pl.BlockSpec((1, fout), lambda i: (0, 0)),      # bias
        ],
        out_specs=(
            pl.BlockSpec((tm, fout), lambda i: (i, 0)),
            pl.BlockSpec((tm, fout), lambda i: (i, 0)),
        ),
        compiler_params=pltpu.CompilerParams(
            dimension_semantics=("parallel",),
            vmem_limit_bytes=vmem_limit,
        ),
        cost_estimate=cost,
    )(x, wl_t, wr_t, b)


# ---------------------------------------------------------------------------
# Kernel 2: aggregation with the NEXT layer's transform fused into the epilogue
#   out     = relu((A @ H) * inv_deg + S)
#   H_next  = bf16(out) @ Wl_next ;  S_next = bf16(out) @ Wr_next + b_next
# ---------------------------------------------------------------------------
def _aggregate_fused_kernel(a_ref, h_ref, s_ref, dinv_ref, wl_ref, wr_ref, b_ref,
                            hn_ref, sn_ref, acc_ref):
    k = pl.program_id(1)

    @pl.when(k == 0)
    def _():
        acc_ref[...] = jnp.zeros_like(acc_ref)

    acc_ref[...] += jnp.dot(a_ref[...], h_ref[...],
                            preferred_element_type=jnp.float32)

    @pl.when(k == pl.num_programs(1) - 1)
    def _():
        # Aggregate is HBM-bound -> the two small epilogue matmuls ride for free on the MXU.
        out = jnp.maximum(acc_ref[...] * dinv_ref[...] + s_ref[...], 0.0)
        out_bf = out.astype(jnp.bfloat16)
        hn_ref[...] = jnp.dot(out_bf, wl_ref[...],
                              preferred_element_type=jnp.float32).astype(jnp.bfloat16)
        sn_ref[...] = jnp.dot(out_bf, wr_ref[...],
                              preferred_element_type=jnp.float32) + b_ref[...]


def aggregate_fused_pallas(a, h, s, inv_deg, wl_next, wr_next, b_next, tm, tk, vmem_limit):
    """a:[Np,Np] bf16 edge counts, h:[Np,F] bf16, s:[Np,F] f32, inv_deg:[Np,1] f32."""
    n = a.shape[0]
    fin = h.shape[1]
    fnext = wl_next.shape[1]
    cost = pl.CostEstimate(
        flops=2 * n * n * fin + 4 * n * fin * fnext,
        transcendentals=0,
        bytes_accessed=int(a.size * 2 + (n // tm) * h.size * 2 + s.size * 4
                           + inv_deg.size * 4 + n * fnext * 6),
    )
    return pl.pallas_call(
        _aggregate_fused_kernel,
        out_shape=(
            jax.ShapeDtypeStruct((n, fnext), jnp.bfloat16),  # H_{l+1}
            jax.ShapeDtypeStruct((n, fnext), jnp.float32),   # S_{l+1}
        ),
        grid=(n // tm, n // tk),
        in_specs=[
            pl.BlockSpec((tm, tk), lambda i, k: (i, k)),       # A tile (edge counts, bf16)
            pl.BlockSpec((tk, fin), lambda i, k: (k, 0)),      # H K-tile
            pl.BlockSpec((tm, fin), lambda i, k: (i, 0)),      # S row tile
            pl.BlockSpec((tm, 1), lambda i, k: (i, 0)),        # 1/deg row scale (f32)
            pl.BlockSpec((fin, fnext), lambda i, k: (0, 0)),   # next-layer W_l^T (resident)
            pl.BlockSpec((fin, fnext), lambda i, k: (0, 0)),   # next-layer W_r^T (resident)
            pl.BlockSpec((1, fnext), lambda i, k: (0, 0)),     # next-layer bias
        ],
        out_specs=(
            pl.BlockSpec((tm, fnext), lambda i, k: (i, 0)),
            pl.BlockSpec((tm, fnext), lambda i, k: (i, 0)),
        ),
        scratch_shapes=[pltpu.VMEM((tm, fin), jnp.float32)],
        compiler_params=pltpu.CompilerParams(
            dimension_semantics=("parallel", "arbitrary"),
            vmem_limit_bytes=vmem_limit,
        ),
        cost_estimate=cost,
    )(a, h, s, inv_deg, wl_next, wr_next, b_next)


# ---------------------------------------------------------------------------
# Kernel 3: final-layer aggregation (no relu, no fused transform)
# ---------------------------------------------------------------------------
def _aggregate_last_kernel(a_ref, h_ref, s_ref, dinv_ref, o_ref, acc_ref):
    k = pl.program_id(1)

    @pl.when(k == 0)
    def _():
        acc_ref[...] = jnp.zeros_like(acc_ref)

    acc_ref[...] += jnp.dot(a_ref[...], h_ref[...],
                            preferred_element_type=jnp.float32)

    @pl.when(k == pl.num_programs(1) - 1)
    def _():
        o_ref[...] = (acc_ref[...] * dinv_ref[...] + s_ref[...]).astype(o_ref.dtype)


def aggregate_last_pallas(a, h, s, inv_deg, tm, tk, vmem_limit):
    n = a.shape[0]
    fin = h.shape[1]
    cost = pl.CostEstimate(
        flops=2 * n * n * fin,
        transcendentals=0,
        bytes_accessed=int(a.size * 2 + (n // tm) * h.size * 2 + s.size * 4
                           + inv_deg.size * 4 + n * fin * 4),
    )
    return pl.pallas_call(
        _aggregate_last_kernel,
        out_shape=jax.ShapeDtypeStruct((n, fin), jnp.float32),
        grid=(n // tm, n // tk),
        in_specs=[
            pl.BlockSpec((tm, tk), lambda i, k: (i, k)),
            pl.BlockSpec((tk, fin), lambda i, k: (k, 0)),
            pl.BlockSpec((tm, fin), lambda i, k: (i, 0)),
            pl.BlockSpec((tm, 1), lambda i, k: (i, 0)),
        ],
        out_specs=pl.BlockSpec((tm, fin), lambda i, k: (i, 0)),
        scratch_shapes=[pltpu.VMEM((tm, fin), jnp.float32)],
        compiler_params=pltpu.CompilerParams(
            dimension_semantics=("parallel", "arbitrary"),
            vmem_limit_bytes=vmem_limit,
        ),
        cost_estimate=cost,
    )(a, h, s, inv_deg)


# ---------------------------------------------------------------------------
# Graph / parameter helpers
# ---------------------------------------------------------------------------
def build_graph_operands(edge_index, num_nodes, padded_nodes):
    """Dense edge-count adjacency (messages src -> tgt) + 1/in-degree, padded.

    A entries are small integer edge counts (exact in bf16); the mean normalization is a
    separate f32 vector so no 1/deg rounding is baked into A.  Duplicate edges count
    toward both sum and degree (matches PyG scatter-mean).  Build ONCE per graph, outside
    the jitted forward.
    """
    src, tgt = edge_index[0], edge_index[1]
    a = jnp.zeros((num_nodes, num_nodes), jnp.float32).at[tgt, src].add(1.0)
    deg = a.sum(axis=1, keepdims=True)
    inv_deg = jnp.where(deg > 0, 1.0 / jnp.maximum(deg, 1.0), 0.0)  # 0-deg rows -> 0 (PyG)
    pad = padded_nodes - num_nodes
    a = jnp.pad(a, ((0, pad), (0, pad))).astype(jnp.bfloat16)
    inv_deg = jnp.pad(inv_deg, ((0, pad), (0, 0)))  # padded rows scale to 0
    return a, inv_deg


def init_params(key, num_feats, dim_hidden, num_classes, num_layers):
    """Deterministic synthetic parameters. Weights stored pre-transposed: [Fin, Fout]."""
    dims = [num_feats] + [dim_hidden] * (num_layers - 1) + [num_classes]
    params = []
    for li in range(num_layers):
        fin, fout = dims[li], dims[li + 1]
        key, k1, k2, k3 = jax.random.split(key, 4)
        wl_t = jax.random.normal(k1, (fin, fout), jnp.float32) * 0.1
        wr_t = jax.random.normal(k2, (fin, fout), jnp.float32) * 0.1
        b = jax.random.normal(k3, (1, fout), jnp.float32) * 0.01
        params.append((wl_t, wr_t, b))
    return params


# ---------------------------------------------------------------------------
# Forward pass
# ---------------------------------------------------------------------------
def sage_forward(x, a, inv_deg, params):
    """x:[N,F] f32 (unpadded), a:[Np,Np] bf16 edge counts, inv_deg:[Np,1] f32."""
    # F.dropout is identity (eval mode, training=False).
    n, f_in = x.shape
    n_p = a.shape[0]
    num_layers = len(params)
    num_classes = params[-1][0].shape[1]

    vmem_limit = _vmem_limit_bytes()

    # Pad parameters to 128-lane multiples; weights pre-transposed [Fin_p, Fout_p] bf16.
    padded = []
    for wl_t, wr_t, b in params:
        fin, fout = wl_t.shape
        fin_p, fout_p = _round_up(fin, LANE), _round_up(fout, LANE)
        wl_p = jnp.pad(wl_t, ((0, fin_p - fin), (0, fout_p - fout))).astype(jnp.bfloat16)
        wr_p = jnp.pad(wr_t, ((0, fin_p - fin), (0, fout_p - fout))).astype(jnp.bfloat16)
        b_p = jnp.pad(b, ((0, 0), (0, fout_p - fout)))
        padded.append((wl_p, wr_p, b_p))

    fmax_p = max(w.shape[1] for (w, _, _) in padded)
    tm, tk = _pick_agg_tiles(n_p, fmax_p, vmem_limit)

    # Layer 0 transform (the only stand-alone transform; later layers' transforms are
    # fused into the previous layer's aggregate epilogue).
    fin0_p = padded[0][0].shape[0]
    x_p = jnp.pad(x, ((0, n_p - n), (0, fin0_p - f_in)))
    h, s = transform_pallas(x_p, *padded[0], vmem_limit)

    # Layers 0 .. L-2: aggregate + relu, with layer l+1's transform fused in.
    for li in range(num_layers - 1):
        wl_n, wr_n, b_n = padded[li + 1]
        h, s = aggregate_fused_pallas(a, h, s, inv_deg, wl_n, wr_n, b_n, tm, tk, vmem_limit)

    # Last layer: aggregate only (no relu), f32 logits.
    out = aggregate_last_pallas(a, h, s, inv_deg, tm, tk, vmem_limit)
    return out[:n, :num_classes]


def sage_reference(x, edge_index, params):
    """Pure-JAX f32 reference of the same forward pass."""
    n = x.shape[0]
    src, tgt = edge_index[0], edge_index[1]
    a = jnp.zeros((n, n), jnp.float32).at[tgt, src].add(1.0)
    deg = a.sum(axis=1, keepdims=True)
    a = a / jnp.maximum(deg, 1.0)
    num_layers = len(params)
    for li, (wl_t, wr_t, b) in enumerate(params):
        out = (a @ x) @ wl_t + x @ wr_t + b
        x = jnp.maximum(out, 0.0) if li < num_layers - 1 else out
    return x


if __name__ == "__main__":
    key = jax.random.PRNGKey(0)

    # Small synthetic graph consistent with the module's constructor shapes.
    num_nodes = 64
    num_edges = 256
    num_feats = 32
    dim_hidden = 32
    num_classes = 8
    num_layers = 3

    key, kx, ke1, ke2 = jax.random.split(key, 4)
    x = jax.random.normal(kx, (num_nodes, num_feats), jnp.float32)
    edge_index = jnp.stack(
        [
            jax.random.randint(ke1, (num_edges,), 0, num_nodes),
            jax.random.randint(ke2, (num_edges,), 0, num_nodes),
        ],
        axis=0,
    )

    params = init_params(key, num_feats, dim_hidden, num_classes, num_layers)

    # Adjacency operands are per-graph constants: built once, outside the jitted forward.
    n_p = _round_up(num_nodes, LANE)
    a, inv_deg = build_graph_operands(edge_index, num_nodes, n_p)

    fwd = jax.jit(sage_forward)
    out = jax.block_until_ready(fwd(x, a, inv_deg, params))
    assert out.shape == (num_nodes, num_classes)

    # Correctness check against a pure-JAX f32 reference (bf16 MXU inputs, f32 accumulation).
    ref = sage_reference(x, edge_index, params)
    assert jnp.allclose(out, ref, atol=3e-2, rtol=3e-2), float(jnp.max(jnp.abs(out - ref)))

    print("KERNEL_OK")
</pallas_src>

<mosaic_0001>
module attributes {stable_mosaic.version = 11 : i64} {
  func.func @_transform_kernel(%arg0: i32, %arg1: memref<128x128xf32, #tpu.memory_space<vmem>>, %arg2: memref<128x128xbf16, #tpu.memory_space<vmem>>, %arg3: memref<128x128xbf16, #tpu.memory_space<vmem>>, %arg4: memref<1x128xf32, #tpu.memory_space<vmem>>, %arg5: memref<128x128xbf16, #tpu.memory_space<vmem>>, %arg6: memref<128x128xf32, #tpu.memory_space<vmem>>) attributes {dimension_semantics = [#tpu.dimension_semantics<parallel>], iteration_bounds = array<i64: 1>, scalar_prefetch = 0 : i64, scratch_operands = 0 : i64, tpu.core_type = #tpu.core_type<tc>, window_params = [{transform_indices = @transform_0, window_bounds = array<i64: 128, 128>}, {pipeline_mode = #tpu.pipeline_mode<synchronous>, transform_indices = @transform_1, window_bounds = array<i64: 128, 128>}, {pipeline_mode = #tpu.pipeline_mode<synchronous>, transform_indices = @transform_2, window_bounds = array<i64: 128, 128>}, {pipeline_mode = #tpu.pipeline_mode<synchronous>, transform_indices = @transform_3, window_bounds = array<i64: 1, 128>}, {transform_indices = @transform_4, window_bounds = array<i64: 128, 128>}, {transform_indices = @transform_5, window_bounds = array<i64: 128, 128>}]} {
    %c0 = arith.constant 0 : index
    %c0_0 = arith.constant 0 : index
    %0 = vector.load %arg1[%c0, %c0_0] : memref<128x128xf32, #tpu.memory_space<vmem>>, vector<128x128xf32>
    %1 = arith.truncf %0 : vector<128x128xf32> to vector<128x128xbf16>
    %c0_1 = arith.constant 0 : index
    %c0_2 = arith.constant 0 : index
    %2 = vector.load %arg2[%c0_1, %c0_2] : memref<128x128xbf16, #tpu.memory_space<vmem>>, vector<128x128xbf16>
    %cst = arith.constant dense<0.000000e+00> : vector<128x128xf32>
    %3 = tpu.matmul %1, %2, %cst {dimension_numbers = #tpu.dot_dimension_numbers<[1], [0], [0], [1], [0, 0, 1, 1], [], []>} : vector<128x128xbf16>, vector<128x128xbf16>, vector<128x128xf32> -> vector<128x128xf32>
    %4 = arith.truncf %3 : vector<128x128xf32> to vector<128x128xbf16>
    %c0_3 = arith.constant 0 : index
    %c0_4 = arith.constant 0 : index
    %5 = vector.load %arg5[%c0_3, %c0_4] : memref<128x128xbf16, #tpu.memory_space<vmem>>, vector<128x128xbf16>
    tpu.vector_store %arg5[%c0_3, %c0_4], %4 {strides = array<i32>} : memref<128x128xbf16, #tpu.memory_space<vmem>>, vector<128x128xbf16>,
    %c0_5 = arith.constant 0 : index
    %c0_6 = arith.constant 0 : index
    %6 = vector.load %arg3[%c0_5, %c0_6] : memref<128x128xbf16, #tpu.memory_space<vmem>>, vector<128x128xbf16>
    %cst_7 = arith.constant dense<0.000000e+00> : vector<128x128xf32>
    %7 = tpu.matmul %1, %6, %cst_7 {dimension_numbers = #tpu.dot_dimension_numbers<[1], [0], [0], [1], [0, 0, 1, 1], [], []>} : vector<128x128xbf16>, vector<128x128xbf16>, vector<128x128xf32> -> vector<128x128xf32>
    %c0_8 = arith.constant 0 : index
    %c0_9 = arith.constant 0 : index
    %8 = vector.load %arg4[%c0_8, %c0_9] : memref<1x128xf32, #tpu.memory_space<vmem>>, vector<1x128xf32>
    %9 = vector.broadcast %8 : vector<1x128xf32> to vector<128x128xf32>
    %10 = arith.addf %7, %9 : vector<128x128xf32>
    %c0_10 = arith.constant 0 : index
    %c0_11 = arith.constant 0 : index
    %11 = vector.load %arg6[%c0_10, %c0_11] : memref<128x128xf32, #tpu.memory_space<vmem>>, vector<128x128xf32>
    tpu.vector_store %arg6[%c0_10, %c0_11], %10 {strides = array<i32>} : memref<128x128xf32, #tpu.memory_space<vmem>>, vector<128x128xf32>,
    return
  }
  func.func @transform_0(%arg0: i32) -> (i32, i32) {
    %c0_i32 = arith.constant 0 : i32
    %c0_i32_0 = arith.constant 0 : i32
    return %arg0, %c0_i32 : i32, i32
  }
  func.func @transform_1(%arg0: i32) -> (i32, i32) {
    %c0_i32 = arith.constant 0 : i32
    %c0_i32_0 = arith.constant 0 : i32
    %c0_i32_1 = arith.constant 0 : i32
    return %c0_i32, %c0_i32_0 : i32, i32
  }
  func.func @transform_2(%arg0: i32) -> (i32, i32) {
    %c0_i32 = arith.constant 0 : i32
    %c0_i32_0 = arith.constant 0 : i32
    %c0_i32_1 = arith.constant 0 : i32
    return %c0_i32, %c0_i32_0 : i32, i32
  }
  func.func @transform_3(%arg0: i32) -> (i32, i32) {
    %c0_i32 = arith.constant 0 : i32
    %c0_i32_0 = arith.constant 0 : i32
    %c0_i32_1 = arith.constant 0 : i32
    return %c0_i32, %c0_i32_0 : i32, i32
  }
  func.func @transform_4(%arg0: i32) -> (i32, i32) {
    %c0_i32 = arith.constant 0 : i32
    %c0_i32_0 = arith.constant 0 : i32
    return %arg0, %c0_i32 : i32, i32
  }
  func.func @transform_5(%arg0: i32) -> (i32, i32) {
    %c0_i32 = arith.constant 0 : i32
    %c0_i32_0 = arith.constant 0 : i32
    return %arg0, %c0_i32 : i32, i32
  }
}

module attributes {stable_mosaic.version = 11 : i64} {
  func.func @_aggregate_fused_kernel(%arg0: i32, %arg1: i32, %arg2: memref<128x128xbf16, #tpu.memory_space<vmem>>, %arg3: memref<128x128xbf16, #tpu.memory_space<vmem>>, %arg4: memref<128x128xf32, #tpu.memory_space<vmem>>, %arg5: memref<128x1xf32, #tpu.memory_space<vmem>>, %arg6: memref<128x128xbf16, #tpu.memory_space<vmem>>, %arg7: memref<128x128xbf16, #tpu.memory_space<vmem>>, %arg8: memref<1x128xf32, #tpu.memory_space<vmem>>, %arg9: memref<128x128xbf16, #tpu.memory_space<vmem>>, %arg10: memref<128x128xf32, #tpu.memory_space<vmem>>, %arg11: memref<128x128xf32, #tpu.memory_space<vmem>>) attributes {dimension_semantics = [#tpu.dimension_semantics<parallel>, #tpu.dimension_semantics<arbitrary>], iteration_bounds = array<i64: 1, 1>, scalar_prefetch = 0 : i64, scratch_operands = 1 : i64, tpu.core_type = #tpu.core_type<tc>, window_params = [{transform_indices = @transform_0, window_bounds = array<i64: 128, 128>}, {transform_indices = @transform_1, window_bounds = array<i64: 128, 128>}, {transform_indices = @transform_2, window_bounds = array<i64: 128, 128>}, {transform_indices = @transform_3, window_bounds = array<i64: 128, 1>}, {pipeline_mode = #tpu.pipeline_mode<synchronous>, transform_indices = @transform_4, window_bounds = array<i64: 128, 128>}, {pipeline_mode = #tpu.pipeline_mode<synchronous>, transform_indices = @transform_5, window_bounds = array<i64: 128, 128>}, {pipeline_mode = #tpu.pipeline_mode<synchronous>, transform_indices = @transform_6, window_bounds = array<i64: 1, 128>}, {transform_indices = @transform_7, window_bounds = array<i64: 128, 128>}, {transform_indices = @transform_8, window_bounds = array<i64: 128, 128>}]} {
    %c0_i32 = arith.constant 0 : i32
    %0 = arith.cmpi eq, %arg1, %c0_i32 : i32
    %1 = arith.extui %0 : i1 to i32
    %c0_i32_0 = arith.constant 0 : i32
    %2 = arith.cmpi ne, %1, %c0_i32_0 : i32
    scf.if %2 {
      %cst_10 = arith.constant 0.000000e+00 : f32
      %12 = vector.broadcast %cst_10 : f32 to vector<128x128xf32>
      %c0_11 = arith.constant 0 : index
      %c0_12 = arith.constant 0 : index
      %13 = vector.load %arg11[%c0_11, %c0_12] : memref<128x128xf32, #tpu.memory_space<vmem>>, vector<128x128xf32>
      tpu.vector_store %arg11[%c0_11, %c0_12], %12 {strides = array<i32>} : memref<128x128xf32, #tpu.memory_space<vmem>>, vector<128x128xf32>,
    } else {
    }
    %c0 = arith.constant 0 : index
    %c0_1 = arith.constant 0 : index
    %3 = vector.load %arg11[%c0, %c0_1] : memref<128x128xf32, #tpu.memory_space<vmem>>, vector<128x128xf32>
    %c0_2 = arith.constant 0 : index
    %c0_3 = arith.constant 0 : index
    %4 = vector.load %arg2[%c0_2, %c0_3] : memref<128x128xbf16, #tpu.memory_space<vmem>>, vector<128x128xbf16>
    %c0_4 = arith.constant 0 : index
    %c0_5 = arith.constant 0 : index
    %5 = vector.load %arg3[%c0_4, %c0_5] : memref<128x128xbf16, #tpu.memory_space<vmem>>, vector<128x128xbf16>
    %cst = arith.constant dense<0.000000e+00> : vector<128x128xf32>
    %6 = tpu.matmul %4, %5, %cst {dimension_numbers = #tpu.dot_dimension_numbers<[1], [0], [0], [1], [0, 0, 1, 1], [], []>} : vector<128x128xbf16>, vector<128x128xbf16>, vector<128x128xf32> -> vector<128x128xf32>
    %7 = arith.addf %3, %6 : vector<128x128xf32>
    %c0_6 = arith.constant 0 : index
    %c0_7 = arith.constant 0 : index
    %8 = vector.load %arg11[%c0_6, %c0_7] : memref<128x128xf32, #tpu.memory_space<vmem>>, vector<128x128xf32>
    tpu.vector_store %arg11[%c0_6, %c0_7], %7 {strides = array<i32>} : memref<128x128xf32, #tpu.memory_space<vmem>>, vector<128x128xf32>,
    %c0_i32_8 = arith.constant 0 : i32
    %9 = arith.cmpi eq, %arg1, %c0_i32_8 : i32
    %10 = arith.extui %9 : i1 to i32
    %c0_i32_9 = arith.constant 0 : i32
    %11 = arith.cmpi ne, %10, %c0_i32_9 : i32
    scf.if %11 {
      %c0_10 = arith.constant 0 : index
      %c0_11 = arith.constant 0 : index
      %12 = vector.load %arg11[%c0_10, %c0_11] : memref<128x128xf32, #tpu.memory_space<vmem>>, vector<128x128xf32>
      %c0_12 = arith.constant 0 : index
      %c0_13 = arith.constant 0 : index
      %13 = vector.load %arg5[%c0_12, %c0_13] : memref<128x1xf32, #tpu.memory_space<vmem>>, vector<128x1xf32>
      %14 = vector.broadcast %13 : vector<128x1xf32> to vector<128x128xf32>
      %15 = arith.mulf %12, %14 : vector<128x128xf32>
      %c0_14 = arith.constant 0 : index
      %c0_15 = arith.constant 0 : index
      %16 = vector.load %arg4[%c0_14, %c0_15] : memref<128x128xf32, #tpu.memory_space<vmem>>, vector<128x128xf32>
      %17 = arith.addf %15, %16 : vector<128x128xf32>
      %cst_16 = arith.constant 0.000000e+00 : f32
      %18 = vector.broadcast %cst_16 : f32 to vector<128x128xf32>
      %19 = arith.maximumf %17, %18 : vector<128x128xf32>
      %20 = arith.truncf %19 : vector<128x128xf32> to vector<128x128xbf16>
      %c0_17 = arith.constant 0 : index
      %c0_18 = arith.constant 0 : index
      %21 = vector.load %arg6[%c0_17, %c0_18] : memref<128x128xbf16, #tpu.memory_space<vmem>>, vector<128x128xbf16>
      %cst_19 = arith.constant dense<0.000000e+00> : vector<128x128xf32>
      %22 = tpu.matmul %20, %21, %cst_19 {dimension_numbers = #tpu.dot_dimension_numbers<[1], [0], [0], [1], [0, 0, 1, 1], [], []>} : vector<128x128xbf16>, vector<128x128xbf16>, vector<128x128xf32> -> vector<128x128xf32>
      %23 = arith.truncf %22 : vector<128x128xf32> to vector<128x128xbf16>
      %c0_20 = arith.constant 0 : index
      %c0_21 = arith.constant 0 : index
      %24 = vector.load %arg9[%c0_20, %c0_21] : memref<128x128xbf16, #tpu.memory_space<vmem>>, vector<128x128xbf16>
      tpu.vector_store %arg9[%c0_20, %c0_21], %23 {strides = array<i32>} : memref<128x128xbf16, #tpu.memory_space<vmem>>, vector<128x128xbf16>,
      %c0_22 = arith.constant 0 : index
      %c0_23 = arith.constant 0 : index
      %25 = vector.load %arg7[%c0_22, %c0_23] : memref<128x128xbf16, #tpu.memory_space<vmem>>, vector<128x128xbf16>
      %cst_24 = arith.constant dense<0.000000e+00> : vector<128x128xf32>
      %26 = tpu.matmul %20, %25, %cst_24 {dimension_numbers = #tpu.dot_dimension_numbers<[1], [0], [0], [1], [0, 0, 1, 1], [], []>} : vector<128x128xbf16>, vector<128x128xbf16>, vector<128x128xf32> -> vector<128x128xf32>
      %c0_25 = arith.constant 0 : index
      %c0_26 = arith.constant 0 : index
      %27 = vector.load %arg8[%c0_25, %c0_26] : memref<1x128xf32, #tpu.memory_space<vmem>>, vector<1x128xf32>
      %28 = vector.broadcast %27 : vector<1x128xf32> to vector<128x128xf32>
      %29 = arith.addf %26, %28 : vector<128x128xf32>
      %c0_27 = arith.constant 0 : index
      %c0_28 = arith.constant 0 : index
      %30 = vector.load %arg10[%c0_27, %c0_28] : memref<128x128xf32, #tpu.memory_space<vmem>>, vector<128x128xf32>
      tpu.vector_store %arg10[%c0_27, %c0_28], %29 {strides = array<i32>} : memref<128x128xf32, #tpu.memory_space<vmem>>, vector<128x128xf32>,
    } else {
    }
    return
  }
  func.func @transform_0(%arg0: i32, %arg1: i32) -> (i32, i32) {
    %c0_i32 = arith.constant 0 : i32
    return %arg0, %arg1 : i32, i32
  }
  func.func @transform_1(%arg0: i32, %arg1: i32) -> (i32, i32) {
    %c0_i32 = arith.constant 0 : i32
    %c0_i32_0 = arith.constant 0 : i32
    return %arg1, %c0_i32 : i32, i32
  }
  func.func @transform_2(%arg0: i32, %arg1: i32) -> (i32, i32) {
    %c0_i32 = arith.constant 0 : i32
    %c0_i32_0 = arith.constant 0 : i32
    return %arg0, %c0_i32 : i32, i32
  }
  func.func @transform_3(%arg0: i32, %arg1: i32) -> (i32, i32) {
    %c0_i32 = arith.constant 0 : i32
    %c0_i32_0 = arith.constant 0 : i32
    return %arg0, %c0_i32 : i32, i32
  }
  func.func @transform_4(%arg0: i32, %arg1: i32) -> (i32, i32) {
    %c0_i32 = arith.constant 0 : i32
    %c0_i32_0 = arith.constant 0 : i32
    %c0_i32_1 = arith.constant 0 : i32
    return %c0_i32, %c0_i32_0 : i32, i32
  }
  func.func @transform_5(%arg0: i32, %arg1: i32) -> (i32, i32) {
    %c0_i32 = arith.constant 0 : i32
    %c0_i32_0 = arith.constant 0 : i32
    %c0_i32_1 = arith.constant 0 : i32
    return %c0_i32, %c0_i32_0 : i32, i32
  }
  func.func @transform_6(%arg0: i32, %arg1: i32) -> (i32, i32) {
    %c0_i32 = arith.constant 0 : i32
    %c0_i32_0 = arith.constant 0 : i32
    %c0_i32_1 = arith.constant 0 : i32
    return %c0_i32, %c0_i32_0 : i32, i32
  }
  func.func @transform_7(%arg0: i32, %arg1: i32) -> (i32, i32) {
    %c0_i32 = arith.constant 0 : i32
    %c0_i32_0 = arith.constant 0 : i32
    return %arg0, %c0_i32 : i32, i32
  }
  func.func @transform_8(%arg0: i32, %arg1: i32) -> (i32, i32) {
    %c0_i32 = arith.constant 0 : i32
    %c0_i32_0 = arith.constant 0 : i32
    return %arg0, %c0_i32 : i32, i32
  }
}

module attributes {stable_mosaic.version = 11 : i64} {
  func.func @_aggregate_last_kernel(%arg0: i32, %arg1: i32, %arg2: memref<128x128xbf16, #tpu.memory_space<vmem>>, %arg3: memref<128x128xbf16, #tpu.memory_space<vmem>>, %arg4: memref<128x128xf32, #tpu.memory_space<vmem>>, %arg5: memref<128x1xf32, #tpu.memory_space<vmem>>, %arg6: memref<128x128xf32, #tpu.memory_space<vmem>>, %arg7: memref<128x128xf32, #tpu.memory_space<vmem>>) attributes {dimension_semantics = [#tpu.dimension_semantics<parallel>, #tpu.dimension_semantics<arbitrary>], iteration_bounds = array<i64: 1, 1>, scalar_prefetch = 0 : i64, scratch_operands = 1 : i64, tpu.core_type = #tpu.core_type<tc>, window_params = [{transform_indices = @transform_0, window_bounds = array<i64: 128, 128>}, {transform_indices = @transform_1, window_bounds = array<i64: 128, 128>}, {transform_indices = @transform_2, window_bounds = array<i64: 128, 128>}, {transform_indices = @transform_3, window_bounds = array<i64: 128, 1>}, {transform_indices = @transform_4, window_bounds = array<i64: 128, 128>}]} {
    %c0_i32 = arith.constant 0 : i32
    %0 = arith.cmpi eq, %arg1, %c0_i32 : i32
    %1 = arith.extui %0 : i1 to i32
    %c0_i32_0 = arith.constant 0 : i32
    %2 = arith.cmpi ne, %1, %c0_i32_0 : i32
    scf.if %2 {
      %cst_10 = arith.constant 0.000000e+00 : f32
      %12 = vector.broadcast %cst_10 : f32 to vector<128x128xf32>
      %c0_11 = arith.constant 0 : index
      %c0_12 = arith.constant 0 : index
      %13 = vector.load %arg7[%c0_11, %c0_12] : memref<128x128xf32, #tpu.memory_space<vmem>>, vector<128x128xf32>
      tpu.vector_store %arg7[%c0_11, %c0_12], %12 {strides = array<i32>} : memref<128x128xf32, #tpu.memory_space<vmem>>, vector<128x128xf32>,
    } else {
    }
    %c0 = arith.constant 0 : index
    %c0_1 = arith.constant 0 : index
    %3 = vector.load %arg7[%c0, %c0_1] : memref<128x128xf32, #tpu.memory_space<vmem>>, vector<128x128xf32>
    %c0_2 = arith.constant 0 : index
    %c0_3 = arith.constant 0 : index
    %4 = vector.load %arg2[%c0_2, %c0_3] : memref<128x128xbf16, #tpu.memory_space<vmem>>, vector<128x128xbf16>
    %c0_4 = arith.constant 0 : index
    %c0_5 = arith.constant 0 : index
    %5 = vector.load %arg3[%c0_4, %c0_5] : memref<128x128xbf16, #tpu.memory_space<vmem>>, vector<128x128xbf16>
    %cst = arith.constant dense<0.000000e+00> : vector<128x128xf32>
    %6 = tpu.matmul %4, %5, %cst {dimension_numbers = #tpu.dot_dimension_numbers<[1], [0], [0], [1], [0, 0, 1, 1], [], []>} : vector<128x128xbf16>, vector<128x128xbf16>, vector<128x128xf32> -> vector<128x128xf32>
    %7 = arith.addf %3, %6 : vector<128x128xf32>
    %c0_6 = arith.constant 0 : index
    %c0_7 = arith.constant 0 : index
    %8 = vector.load %arg7[%c0_6, %c0_7] : memref<128x128xf32, #tpu.memory_space<vmem>>, vector<128x128xf32>
    tpu.vector_store %arg7[%c0_6, %c0_7], %7 {strides = array<i32>} : memref<128x128xf32, #tpu.memory_space<vmem>>, vector<128x128xf32>,
    %c0_i32_8 = arith.constant 0 : i32
    %9 = arith.cmpi eq, %arg1, %c0_i32_8 : i32
    %10 = arith.extui %9 : i1 to i32
    %c0_i32_9 = arith.constant 0 : i32
    %11 = arith.cmpi ne, %10, %c0_i32_9 : i32
    scf.if %11 {
      %c0_10 = arith.constant 0 : index
      %c0_11 = arith.constant 0 : index
      %12 = vector.load %arg7[%c0_10, %c0_11] : memref<128x128xf32, #tpu.memory_space<vmem>>, vector<128x128xf32>
      %c0_12 = arith.constant 0 : index
      %c0_13 = arith.constant 0 : index
      %13 = vector.load %arg5[%c0_12, %c0_13] : memref<128x1xf32, #tpu.memory_space<vmem>>, vector<128x1xf32>
      %14 = vector.broadcast %13 : vector<128x1xf32> to vector<128x128xf32>
      %15 = arith.mulf %12, %14 : vector<128x128xf32>
      %c0_14 = arith.constant 0 : index
      %c0_15 = arith.constant 0 : index
      %16 = vector.load %arg4[%c0_14, %c0_15] : memref<128x128xf32, #tpu.memory_space<vmem>>, vector<128x128xf32>
      %17 = arith.addf %15, %16 : vector<128x128xf32>
      %c0_16 = arith.constant 0 : index
      %c0_17 = arith.constant 0 : index
      %18 = vector.load %arg6[%c0_16, %c0_17] : memref<128x128xf32, #tpu.memory_space<vmem>>, vector<128x128xf32>
      tpu.vector_store %arg6[%c0_16, %c0_17], %17 {strides = array<i32>} : memref<128x128xf32, #tpu.memory_space<vmem>>, vector<128x128xf32>,
    } else {
    }
    return
  }
  func.func @transform_0(%arg0: i32, %arg1: i32) -> (i32, i32) {
    %c0_i32 = arith.constant 0 : i32
    return %arg0, %arg1 : i32, i32
  }
  func.func @transform_1(%arg0: i32, %arg1: i32) -> (i32, i32) {
    %c0_i32 = arith.constant 0 : i32
    %c0_i32_0 = arith.constant 0 : i32
    return %arg1, %c0_i32 : i32, i32
  }
  func.func @transform_2(%arg0: i32, %arg1: i32) -> (i32, i32) {
    %c0_i32 = arith.constant 0 : i32
    %c0_i32_0 = arith.constant 0 : i32
    return %arg0, %c0_i32 : i32, i32
  }
  func.func @transform_3(%arg0: i32, %arg1: i32) -> (i32, i32) {
    %c0_i32 = arith.constant 0 : i32
    %c0_i32_0 = arith.constant 0 : i32
    return %arg0, %c0_i32 : i32, i32
  }
  func.func @transform_4(%arg0: i32, %arg1: i32) -> (i32, i32) {
    %c0_i32 = arith.constant 0 : i32
    %c0_i32_0 = arith.constant 0 : i32
    return %arg0, %c0_i32 : i32, i32
  }
}

</mosaic_0001>

<llo_original>
// kernel: sage_forward.4
$region0: #{sage_forward.4}
  #allocation0 [shape = 'u32[]', space=smem, size = 0x4, offset = 0x4, fixed_abs, tag = 'smem constant byte address 0x4 - core index']
  #allocation1 [shape = 'u32[144,128]{1,0:T(1,128)}', space=vmem, size = 0x12000, scoped, tag = 'internal scratch']
  %s0 = inlined_call_operand.vmem [shape: f32[128,128], index: 0, kind: input, shape index: {}]
  %s1 = inlined_call_operand.vmem [shape: bf16[128,128], index: 1, kind: input, shape index: {}]
  %s2 = inlined_call_operand.vmem [shape: bf16[128,128], index: 2, kind: input, shape index: {}]
  %s3 = inlined_call_operand.vmem [shape: f32[1,128], index: 3, kind: input, shape index: {}]
  %s4 = inlined_call_operand.vmem [shape: bf16[128,128], index: 4, kind: output, shape index: {0}]
  %s5 = inlined_call_operand.vmem [shape: f32[128,128], index: 5, kind: output, shape index: {1}]
  %6 = xla_tuple %s4, %s5
  %s7 = sld [smem:[#allocation0]]
  $region34: #{sage_forward.4} parent=0
    _
  %s9 = ssub.s32 1, %s7
  %s10 = scalar_select 0, %s9, %s7
  // Predicated region
  $region2: #{sage_forward.4} parent=0 // pred_check
    _
  $region3: #{sage_forward.4} parent=0 // pred_check_branch
    %12 = sbr.rel (0) target = $region5
  $region4: #{sage_forward.4} parent=0 // pred_region
    _
  $region5: #{sage_forward.4} parent=0 // pred_fallthru
    _
  // Predicated region
  $region6: #{sage_forward.4} parent=0 // pred_check
    _
  $region7: #{sage_forward.4} parent=0 // pred_check_branch
    %14 = sbr.rel (0) target = $region9
  $region8: #{sage_forward.4} parent=0 // pred_region
    _
  $region9: #{sage_forward.4} parent=0 // pred_fallthru
    _
  // Predicated region
  $region10: #{sage_forward.4} parent=0 // pred_check
    _
  $region11: #{sage_forward.4} parent=0 // pred_check_branch
    %16 = sbr.rel (0) target = $region13
  $region12: #{sage_forward.4} parent=0 // pred_region
    _
  $region13: #{sage_forward.4} parent=0 // pred_fallthru
    _
  // Predicated region
  $region14: #{sage_forward.4} parent=0 // pred_check
    _
  $region15: #{sage_forward.4} parent=0 // pred_check_branch
    %18 = sbr.rel (0) target = $region17
  $region16: #{sage_forward.4} parent=0 // pred_region
    _
  $region17: #{sage_forward.4} parent=0 // pred_fallthru
    _
  %v20 = vld [vmem:[%s0] sm:$0xff]
  %v21 = vld [vmem:[%s0 + $0x8] sm:$0xff]
  %v22 = vld [vmem:[%s0 + $0x10] sm:$0xff]
  %v23 = vld [vmem:[%s0 + $0x18] sm:$0xff]
  %v24 = vld [vmem:[%s0 + $0x20] sm:$0xff]
  %v25 = vld [vmem:[%s0 + $0x28] sm:$0xff]
  %v26 = vld [vmem:[%s0 + $0x30] sm:$0xff]
  %v27 = vld [vmem:[%s0 + $0x38] sm:$0xff]
  %v28 = vld [vmem:[%s0 + $0x40] sm:$0xff]
  %v29 = vld [vmem:[%s0 + $0x48] sm:$0xff]
  %v30 = vld [vmem:[%s0 + $0x50] sm:$0xff]
  %v31 = vld [vmem:[%s0 + $0x58] sm:$0xff]
  %v32 = vld [vmem:[%s0 + $0x60] sm:$0xff]
  %v33 = vld [vmem:[%s0 + $0x68] sm:$0xff]
  %v34 = vld [vmem:[%s0 + $0x70] sm:$0xff]
  %v35 = vld [vmem:[%s0 + $0x78] sm:$0xff]
  %v36 = vpack.c.bf16 %v21, %v20
  %v37 = vpack.c.bf16 %v23, %v22
  %v38 = vpack.c.bf16 %v25, %v24
  %v39 = vpack.c.bf16 %v27, %v26
  %v40 = vpack.c.bf16 %v29, %v28
  %v41 = vpack.c.bf16 %v31, %v30
  %v42 = vpack.c.bf16 %v33, %v32
  %v43 = vpack.c.bf16 %v35, %v34
  %v44 = vld [vmem:[%s1] sm:$0xf]
  %v45 = vld [vmem:[%s1 + $0x4] sm:$0xf]
  %v46 = vld [vmem:[%s1 + $0x8] sm:$0xf]
  %v47 = vld [vmem:[%s1 + $0xc] sm:$0xf]
  %v48 = vld [vmem:[%s1 + $0x10] sm:$0xf]
  %v49 = vld [vmem:[%s1 + $0x14] sm:$0xf]
  %v50 = vld [vmem:[%s1 + $0x18] sm:$0xf]
  %v51 = vld [vmem:[%s1 + $0x1c] sm:$0xf]
  %v52 = vld [vmem:[%s1 + $0x20] sm:$0xf]
  %v53 = vld [vmem:[%s1 + $0x24] sm:$0xf]
  %v54 = vld [vmem:[%s1 + $0x28] sm:$0xf]
  %v55 = vld [vmem:[%s1 + $0x2c] sm:$0xf]
  %v56 = vld [vmem:[%s1 + $0x30] sm:$0xf]
  %v57 = vld [vmem:[%s1 + $0x34] sm:$0xf]
  %v58 = vld [vmem:[%s1 + $0x38] sm:$0xf]
  %v59 = vld [vmem:[%s1 + $0x3c] sm:$0xf]
  %v76 = vunpack.c.l.b16 %v44
  %v77 = vunpack.c.l.b16 %v45
  %v78 = vunpack.c.l.b16 %v46
  %v79 = vunpack.c.l.b16 %v47
  %v80 = vunpack.c.l.b16 %v48
  %v81 = vunpack.c.l.b16 %v49
  %v82 = vunpack.c.l.b16 %v50
  %v83 = vunpack.c.l.b16 %v51
  %v84 = vunpack.c.l.b16 %v52
  %v85 = vunpack.c.l.b16 %v53
  %v86 = vunpack.c.l.b16 %v54
  %v87 = vunpack.c.l.b16 %v55
  %v88 = vunpack.c.l.b16 %v56
  %v89 = vunpack.c.l.b16 %v57
  %v90 = vunpack.c.l.b16 %v58
  %v91 = vunpack.c.l.b16 %v59
  %v92 = vpack.c.b16 %v77, %v76
  %v93 = vpack.c.b16 %v79, %v78
  %v94 = vpack.c.b16 %v81, %v80
  %v95 = vpack.c.b16 %v83, %v82
  %v96 = vpack.c.b16 %v85, %v84
  %v97 = vpack.c.b16 %v87, %v86
  %v98 = vpack.c.b16 %v89, %v88
  %v99 = vpack.c.b16 %v91, %v90
  %108 = vmatprep.subr.bf16.mxu0 0
  %109 = vmatpush1.bf16.msra.mxu0 %v92
  %110 = vmatprep.subr.bf16.mxu0 0
  %111 = vmatpush1.bf16.msra.mxu0 %v93
  %112 = vmatprep.subr.bf16.mxu0 0
  %113 = vmatpush1.bf16.msra.mxu0 %v94
  %114 = vmatprep.subr.bf16.mxu0 0
  %115 = vmatpush1.bf16.msra.mxu0 %v95
  %116 = vmatprep.subr.bf16.mxu0 0
  %117 = vmatpush1.bf16.msra.mxu0 %v96
  %118 = vmatprep.subr.bf16.mxu0 0
  %119 = vmatpush1.bf16.msra.mxu0 %v97
  %120 = vmatprep.subr.bf16.mxu0 0
  %121 = vmatpush1.bf16.msra.mxu0 %v98
  %122 = vmatprep.subr.bf16.mxu0 0
  %123 = vmatpush1.bf16.msra.mxu0 %v99
  %124 = vmatprep.subr.bf16.mxu0 0
  %125 = vmatpush1.bf16.msra.mxu0 0
  %126 = vmatprep.subr.bf16.mxu0 0
  %127 = vmatpush1.bf16.msra.mxu0 0
  %128 = vmatprep.subr.bf16.mxu0 0
  %129 = vmatpush1.bf16.msra.mxu0 0
  %130 = vmatprep.subr.bf16.mxu0 0
  %131 = vmatpush1.bf16.msra.mxu0 0
  %132 = vmatprep.subr.bf16.mxu0 0
  %133 = vmatpush1.bf16.msra.mxu0 0
  %134 = vmatprep.subr.bf16.mxu0 0
  %135 = vmatpush1.bf16.msra.mxu0 0
  %136 = vmatprep.subr.bf16.mxu0 0
  %137 = vmatpush1.bf16.msra.mxu0 0
  %138 = vmatprep.subr.bf16.mxu0 0
  %139 = vmatpush1.bf16.msra.mxu0 0
  %140 = vmatprep.mubr.bf16.mxu0 0
  %141 = vmatmul.mubr.bf16.gmra.mrb[0].mxu0 %v36
  %v142 = vpop.f32.mrb[0].mxu0
  %v143 = vadd.f32 0.0, %v142
  %v144 = vpop.f32.mrb[0].mxu0
  %v145 = vpop.f32.mrb[0].mxu0
  %v146 = vadd.f32 0.0, %v145
  %v147 = vpop.f32.mrb[0].mxu0
  %148 = vmatprep.mubr.bf16.mxu0 0
  %149 = vmatmul.mubr.bf16.gmra.mrb[0].mxu0 %v37
  %v150 = vpop.f32.mrb[0].mxu0
  %v151 = vadd.f32 0.0, %v150
  %v152 = vpop.f32.mrb[0].mxu0
  %v153 = vpop.f32.mrb[0].mxu0
  %v154 = vadd.f32 0.0, %v153
  %v155 = vpop.f32.mrb[0].mxu0
  %156 = vmatprep.mubr.bf16.mxu0 0
  %157 = vmatmul.mubr.bf16.gmra.mrb[0].mxu0 %v38
  %v158 = vpop.f32.mrb[0].mxu0
  %v159 = vadd.f32 0.0, %v158
  %v160 = vpop.f32.mrb[0].mxu0
  %v161 = vpop.f32.mrb[0].mxu0
  %v162 = vadd.f32 0.0, %v161
  %v163 = vpop.f32.mrb[0].mxu0
  %164 = vmatprep.mubr.bf16.mxu0 0
  %165 = vmatmul.mubr.bf16.gmra.mrb[0].mxu0 %v39
  %v166 = vpop.f32.mrb[0].mxu0
  %v167 = vadd.f32 0.0, %v166
  %v168 = vpop.f32.mrb[0].mxu0
  %v169 = vpop.f32.mrb[0].mxu0
  %v170 = vadd.f32 0.0, %v169
  %v171 = vpop.f32.mrb[0].mxu0
  %172 = vmatprep.mubr.bf16.mxu0 0
  %173 = vmatmul.mubr.bf16.gmra.mrb[0].mxu0 %v40
  %v174 = vpop.f32.mrb[0].mxu0
  %v175 = vadd.f32 0.0, %v174
  %v176 = vpop.f32.mrb[0].mxu0
  %v177 = vpop.f32.mrb[0].mxu0
  %v178 = vadd.f32 0.0, %v177
  %v179 = vpop.f32.mrb[0].mxu0
  %180 = vmatprep.mubr.bf16.mxu0 0
  %181 = vmatmul.mubr.bf16.gmra.mrb[0].mxu0 %v41
  %v182 = vpop.f32.mrb[0].mxu0
  %v183 = vadd.f32 0.0, %v182
  %v184 = vpop.f32.mrb[0].mxu0
  %v185 = vpop.f32.mrb[0].mxu0
  %v186 = vadd.f32 0.0, %v185
  %v187 = vpop.f32.mrb[0].mxu0
  %188 = vmatprep.mubr.bf16.mxu0 0
  %189 = vmatmul.mubr.bf16.gmra.mrb[0].mxu0 %v42
  %v190 = vpop.f32.mrb[0].mxu0
  %v191 = vadd.f32 0.0, %v190
  %v192 = vpop.f32.mrb[0].mxu0
  %v193 = vpop.f32.mrb[0].mxu0
  %v194 = vadd.f32 0.0, %v193
  %v195 = vpop.f32.mrb[0].mxu0
  %196 = vmatprep.mubr.bf16.mxu0 0
  %197 = vmatmul.mubr.bf16.gmra.mrb[0].mxu0 %v43
  %v198 = vpop.f32.mrb[0].mxu0
  %v199 = vadd.f32 0.0, %v198
  %v200 = vpop.f32.mrb[0].mxu0
  %v201 = vpop.f32.mrb[0].mxu0
  %v202 = vadd.f32 0.0, %v201
  %v203 = vpop.f32.mrb[0].mxu0
  %204 = vdwg.mxu0
  %v205 = vpack.c.bf16 %v146, %v143
  %v206 = vpack.c.bf16 %v154, %v151
  %v207 = vpack.c.bf16 %v162, %v159
  %v208 = vpack.c.bf16 %v170, %v167
  %v209 = vpack.c.bf16 %v178, %v175
  %v210 = vpack.c.bf16 %v186, %v183
  %v211 = vpack.c.bf16 %v194, %v191
  %v212 = vpack.c.bf16 %v202, %v199
  %v221 = vunpack.c.l.b16 %v205
  %v222 = vunpack.c.h.b16 %v205
  %v223 = vunpack.c.l.b16 %v206
  %v224 = vunpack.c.h.b16 %v206
  %v225 = vunpack.c.l.b16 %v207
  %v226 = vunpack.c.h.b16 %v207
  %v227 = vunpack.c.l.b16 %v208
  %v228 = vunpack.c.h.b16 %v208
  %v229 = vunpack.c.l.b16 %v209
  %v230 = vunpack.c.h.b16 %v209
  %v231 = vunpack.c.l.b16 %v210
  %v232 = vunpack.c.h.b16 %v210
  %v233 = vunpack.c.l.b16 %v211
  %v234 = vunpack.c.h.b16 %v211
  %v235 = vunpack.c.l.b16 %v212
  %v236 = vunpack.c.h.b16 %v212
  %v237 = vpack.c.b16 %v221, %v221
  %v238 = vpack.c.b16 %v222, %v222
  %v239 = vpack.c.b16 %v223, %v223
  %v240 = vpack.c.b16 %v224, %v224
  %v241 = vpack.c.b16 %v225, %v225
  %v242 = vpack.c.b16 %v226, %v226
  %v243 = vpack.c.b16 %v227, %v227
  %v244 = vpack.c.b16 %v228, %v228
  %v245 = vpack.c.b16 %v229, %v229
  %v246 = vpack.c.b16 %v230, %v230
  %v247 = vpack.c.b16 %v231, %v231
  %v248 = vpack.c.b16 %v232, %v232
  %v249 = vpack.c.b16 %v233, %v233
  %v250 = vpack.c.b16 %v234, %v234
  %v251 = vpack.c.b16 %v235, %v235
  %v252 = vpack.c.b16 %v236, %v236
  %269 = vst [vmem:[%s4] sm:$0xf] %v237
  %270 = vst [vmem:[%s4 + $0x4] sm:$0xf] %v238
  %271 = vst [vmem:[%s4 + $0x8] sm:$0xf] %v239
  %272 = vst [vmem:[%s4 + $0xc] sm:$0xf] %v240
  %273 = vst [vmem:[%s4 + $0x10] sm:$0xf] %v241
  %274 = vst [vmem:[%s4 + $0x14] sm:$0xf] %v242
  %275 = vst [vmem:[%s4 + $0x18] sm:$0xf] %v243
  %276 = vst [vmem:[%s4 + $0x1c] sm:$0xf] %v244
  %277 = vst [vmem:[%s4 + $0x20] sm:$0xf] %v245
  %278 = vst [vmem:[%s4 + $0x24] sm:$0xf] %v246
  %279 = vst [vmem:[%s4 + $0x28] sm:$0xf] %v247
  %280 = vst [vmem:[%s4 + $0x2c] sm:$0xf] %v248
  %281 = vst [vmem:[%s4 + $0x30] sm:$0xf] %v249
  %282 = vst [vmem:[%s4 + $0x34] sm:$0xf] %v250
  %283 = vst [vmem:[%s4 + $0x38] sm:$0xf] %v251
  %284 = vst [vmem:[%s4 + $0x3c] sm:$0xf] %v252
  %v285 = vld [vmem:[%s2] sm:$0xf]
  %v286 = vld [vmem:[%s2 + $0x4] sm:$0xf]
  %v287 = vld [vmem:[%s2 + $0x8] sm:$0xf]
  %v288 = vld [vmem:[%s2 + $0xc] sm:$0xf]
  %v289 = vld [vmem:[%s2 + $0x10] sm:$0xf]
  %v290 = vld [vmem:[%s2 + $0x14] sm:$0xf]
  %v291 = vld [vmem:[%s2 + $0x18] sm:$0xf]
  %v292 = vld [vmem:[%s2 + $0x1c] sm:$0xf]
  %v293 = vld [vmem:[%s2 + $0x20] sm:$0xf]
  %v294 = vld [vmem:[%s2 + $0x24] sm:$0xf]
  %v295 = vld [vmem:[%s2 + $0x28] sm:$0xf]
  %v296 = vld [vmem:[%s2 + $0x2c] sm:$0xf]
  %v297 = vld [vmem:[%s2 + $0x30] sm:$0xf]
  %v298 = vld [vmem:[%s2 + $0x34] sm:$0xf]
  %v299 = vld [vmem:[%s2 + $0x38] sm:$0xf]
  %v300 = vld [vmem:[%s2 + $0x3c] sm:$0xf]
  %v301 = vld [vmem:[%s3] sm:$0x1]
  %v303 = vlaneseq
  %v304 = vshrl.u32 %v303, 7
  %v305 = vsub.s32 0, %v304
  %v306 = vrot.slane %v301, %v305
  %v324 = vunpack.c.l.b16 %v285
  %v325 = vunpack.c.l.b16 %v286
  %v326 = vunpack.c.l.b16 %v287
  %v327 = vunpack.c.l.b16 %v288
  %v328 = vunpack.c.l.b16 %v289
  %v329 = vunpack.c.l.b16 %v290
  %v330 = vunpack.c.l.b16 %v291
  %v331 = vunpack.c.l.b16 %v292
  %v332 = vunpack.c.l.b16 %v293
  %v333 = vunpack.c.l.b16 %v294
  %v334 = vunpack.c.l.b16 %v295
  %v335 = vunpack.c.l.b16 %v296
  %v336 = vunpack.c.l.b16 %v297
  %v337 = vunpack.c.l.b16 %v298
  %v338 = vunpack.c.l.b16 %v299
  %v339 = vunpack.c.l.b16 %v300
  %v340 = vpack.c.b16 %v325, %v324
  %v341 = vpack.c.b16 %v327, %v326
  %v342 = vpack.c.b16 %v329, %v328
  %v343 = vpack.c.b16 %v331, %v330
  %v344 = vpack.c.b16 %v333, %v332
  %v345 = vpack.c.b16 %v335, %v334
  %v346 = vpack.c.b16 %v337, %v336
  %v347 = vpack.c.b16 %v339, %v338
  %356 = vmatprep.subr.bf16.mxu0 0
  %357 = vmatpush1.bf16.msra.mxu0 %v340
  %358 = vmatprep.subr.bf16.mxu0 0
  %359 = vmatpush1.bf16.msra.mxu0 %v341
  %360 = vmatprep.subr.bf16.mxu0 0
  %361 = vmatpush1.bf16.msra.mxu0 %v342
  %362 = vmatprep.subr.bf16.mxu0 0
  %363 = vmatpush1.bf16.msra.mxu0 %v343
  %364 = vmatprep.subr.bf16.mxu0 0
  %365 = vmatpush1.bf16.msra.mxu0 %v344
  %366 = vmatprep.subr.bf16.mxu0 0
  %367 = vmatpush1.bf16.msra.mxu0 %v345
  %368 = vmatprep.subr.bf16.mxu0 0
  %369 = vmatpush1.bf16.msra.mxu0 %v346
  %370 = vmatprep.subr.bf16.mxu0 0
  %371 = vmatpush1.bf16.msra.mxu0 %v347
  %372 = vmatprep.subr.bf16.mxu0 0
  %373 = vmatpush1.bf16.msra.mxu0 0
  %374 = vmatprep.subr.bf16.mxu0 0
  %375 = vmatpush1.bf16.msra.mxu0 0
  %376 = vmatprep.subr.bf16.mxu0 0
  %377 = vmatpush1.bf16.msra.mxu0 0
  %378 = vmatprep.subr.bf16.mxu0 0
  %379 = vmatpush1.bf16.msra.mxu0 0
  %380 = vmatprep.subr.bf16.mxu0 0
  %381 = vmatpush1.bf16.msra.mxu0 0
  %382 = vmatprep.subr.bf16.mxu0 0
  %383 = vmatpush1.bf16.msra.mxu0 0
  %384 = vmatprep.subr.bf16.mxu0 0
  %385 = vmatpush1.bf16.msra.mxu0 0
  %386 = vmatprep.subr.bf16.mxu0 0
  %387 = vmatpush1.bf16.msra.mxu0 0
  %388 = vmatprep.mubr.bf16.mxu0 0
  %389 = vmatmul.mubr.bf16.gmra.mrb[0].mxu0 %v36
  %v390 = vpop.f32.mrb[0].mxu0
  %v391 = vadd.f32 %v306, %v390
  %v392 = vpop.f32.mrb[0].mxu0
  %v393 = vpop.f32.mrb[0].mxu0
  %v394 = vadd.f32 %v306, %v393
  %v395 = vpop.f32.mrb[0].mxu0
  %396 = vmatprep.mubr.bf16.mxu0 0
  %397 = vmatmul.mubr.bf16.gmra.mrb[0].mxu0 %v37
  %v398 = vpop.f32.mrb[0].mxu0
  %v399 = vadd.f32 %v306, %v398
  %v400 = vpop.f32.mrb[0].mxu0
  %v401 = vpop.f32.mrb[0].mxu0
  %v402 = vadd.f32 %v306, %v401
  %v403 = vpop.f32.mrb[0].mxu0
  %404 = vmatprep.mubr.bf16.mxu0 0
  %405 = vmatmul.mubr.bf16.gmra.mrb[0].mxu0 %v38
  %v406 = vpop.f32.mrb[0].mxu0
  %v407 = vadd.f32 %v306, %v406
  %v408 = vpop.f32.mrb[0].mxu0
  %v409 = vpop.f32.mrb[0].mxu0
  %v410 = vadd.f32 %v306, %v409
  %v411 = vpop.f32.mrb[0].mxu0
  %412 = vmatprep.mubr.bf16.mxu0 0
  %413 = vmatmul.mubr.bf16.gmra.mrb[0].mxu0 %v39
  %v414 = vpop.f32.mrb[0].mxu0
  %v415 = vadd.f32 %v306, %v414
  %v416 = vpop.f32.mrb[0].mxu0
  %v417 = vpop.f32.mrb[0].mxu0
  %v418 = vadd.f32 %v306, %v417
  %v419 = vpop.f32.mrb[0].mxu0
  %420 = vmatprep.mubr.bf16.mxu0 0
  %421 = vmatmul.mubr.bf16.gmra.mrb[0].mxu0 %v40
  %v422 = vpop.f32.mrb[0].mxu0
  %v423 = vadd.f32 %v306, %v422
  %v424 = vpop.f32.mrb[0].mxu0
  %v425 = vpop.f32.mrb[0].mxu0
  %v426 = vadd.f32 %v306, %v425
  %v427 = vpop.f32.mrb[0].mxu0
  %428 = vmatprep.mubr.bf16.mxu0 0
  %429 = vmatmul.mubr.bf16.gmra.mrb[0].mxu0 %v41
  %v430 = vpop.f32.mrb[0].mxu0
  %v431 = vadd.f32 %v306, %v430
  %v432 = vpop.f32.mrb[0].mxu0
  %v433 = vpop.f32.mrb[0].mxu0
  %v434 = vadd.f32 %v306, %v433
  %v435 = vpop.f32.mrb[0].mxu0
  %436 = vmatprep.mubr.bf16.mxu0 0
  %437 = vmatmul.mubr.bf16.gmra.mrb[0].mxu0 %v42
  %v438 = vpop.f32.mrb[0].mxu0
  %v439 = vadd.f32 %v306, %v438
  %v440 = vpop.f32.mrb[0].mxu0
  %v441 = vpop.f32.mrb[0].mxu0
  %v442 = vadd.f32 %v306, %v441
  %v443 = vpop.f32.mrb[0].mxu0
  %444 = vmatprep.mubr.bf16.mxu0 0
  %445 = vmatmul.mubr.bf16.gmra.mrb[0].mxu0 %v43
  %v446 = vpop.f32.mrb[0].mxu0
  %v447 = vadd.f32 %v306, %v446
  %v448 = vpop.f32.mrb[0].mxu0
  %v449 = vpop.f32.mrb[0].mxu0
  %v450 = vadd.f32 %v306, %v449
  %v451 = vpop.f32.mrb[0].mxu0
  %452 = vdwg.mxu0
  %453 = vst [vmem:[%s5] sm:$0xff] %v391
  %454 = vst [vmem:[%s5 + $0x8] sm:$0xff] %v394
  %455 = vst [vmem:[%s5 + $0x10] sm:$0xff] %v399
  %456 = vst [vmem:[%s5 + $0x18] sm:$0xff] %v402
  %457 = vst [vmem:[%s5 + $0x20] sm:$0xff] %v407
  %458 = vst [vmem:[%s5 + $0x28] sm:$0xff] %v410
  %459 = vst [vmem:[%s5 + $0x30] sm:$0xff] %v415
  %460 = vst [vmem:[%s5 + $0x38] sm:$0xff] %v418
  %461 = vst [vmem:[%s5 + $0x40] sm:$0xff] %v423
  %462 = vst [vmem:[%s5 + $0x48] sm:$0xff] %v426
  %463 = vst [vmem:[%s5 + $0x50] sm:$0xff] %v431
  %464 = vst [vmem:[%s5 + $0x58] sm:$0xff] %v434
  %465 = vst [vmem:[%s5 + $0x60] sm:$0xff] %v439
  %466 = vst [vmem:[%s5 + $0x68] sm:$0xff] %v442
  %467 = vst [vmem:[%s5 + $0x70] sm:$0xff] %v447
  %468 = vst [vmem:[%s5 + $0x78] sm:$0xff] %v450
  // Predicated region
  $region18: #{sage_forward.4} parent=0 // pred_check
    _
  $region19: #{sage_forward.4} parent=0 // pred_check_branch
    %470 = sbr.rel (0) target = $region21
  $region20: #{sage_forward.4} parent=0 // pred_region
    _
  $region21: #{sage_forward.4} parent=0 // pred_fallthru
    _
  // Predicated region
  $region22: #{sage_forward.4} parent=0 // pred_check
    _
  $region23: #{sage_forward.4} parent=0 // pred_check_branch
    %472 = sbr.rel (0) target = $region25
  $region24: #{sage_forward.4} parent=0 // pred_region
    _
  $region25: #{sage_forward.4} parent=0 // pred_fallthru
    _
  // Predicated region
  $region26: #{sage_forward.4} parent=0 // pred_check
    _
  $region27: #{sage_forward.4} parent=0 // pred_check_branch
    %474 = sbr.rel (0) target = $region29
  $region28: #{sage_forward.4} parent=0 // pred_region
    _
  $region29: #{sage_forward.4} parent=0 // pred_fallthru
    _
  // Predicated region
  $region30: #{sage_forward.4} parent=0 // pred_check
    _
  $region31: #{sage_forward.4} parent=0 // pred_check_branch
    %476 = sbr.rel (0) target = $region33
  $region32: #{sage_forward.4} parent=0 // pred_region
    _
  $region33: #{sage_forward.4} parent=0 // pred_fallthru
    _

// kernel: sage_forward.7
$region0: #{sage_forward.7}
  #allocation0 [shape = 'u32[]', space=smem, size = 0x4, offset = 0x4, fixed_abs, tag = 'smem constant byte address 0x4 - core index']
  #allocation1 [shape = 'u32[144,128]{1,0:T(1,128)}', space=vmem, size = 0x12000, scoped, tag = 'internal scratch']
  #allocation2 [shape = 'f32[128,128]{1,0:T(8,128)}', space=vmem, size = 0x10000, scoped, tag = 'scratch operand']
  %s0 = inlined_call_operand.vmem [shape: bf16[128,128], index: 0, kind: input, shape index: {}]
  %s1 = inlined_call_operand.vmem [shape: bf16[128,128], index: 1, kind: input, shape index: {}]
  %s2 = inlined_call_operand.vmem [shape: f32[128,128], index: 2, kind: input, shape index: {}]
  %s3 = inlined_call_operand.vmem [shape: f32[128,1], index: 3, kind: input, shape index: {}]
  %s4 = inlined_call_operand.vmem [shape: f32[128,128], index: 4, kind: output, shape index: {}]
  %s5 = sld [smem:[#allocation0]]
  $region34: #{sage_forward.7} parent=0
    _
  %s7 = ssub.s32 1, %s5
  %s8 = scalar_select 0, %s7, %s5
  // Predicated region
  $region2: #{sage_forward.7} parent=0 // pred_check
    _
  $region3: #{sage_forward.7} parent=0 // pred_check_branch
    %10 = sbr.rel (0) target = $region5
  $region4: #{sage_forward.7} parent=0 // pred_region
    _
  $region5: #{sage_forward.7} parent=0 // pred_fallthru
    _
  // Predicated region
  $region6: #{sage_forward.7} parent=0 // pred_check
    _
  $region7: #{sage_forward.7} parent=0 // pred_check_branch
    %12 = sbr.rel (0) target = $region9
  $region8: #{sage_forward.7} parent=0 // pred_region
    _
  $region9: #{sage_forward.7} parent=0 // pred_fallthru
    _
  // Predicated region
  $region10: #{sage_forward.7} parent=0 // pred_check
    _
  $region11: #{sage_forward.7} parent=0 // pred_check_branch
    %14 = sbr.rel (0) target = $region13
  $region12: #{sage_forward.7} parent=0 // pred_region
    _
  $region13: #{sage_forward.7} parent=0 // pred_fallthru
    _
  // Predicated region
  $region14: #{sage_forward.7} parent=0 // pred_check
    _
  $region15: #{sage_forward.7} parent=0 // pred_check_branch
    %16 = sbr.rel (0) target = $region17
  $region16: #{sage_forward.7} parent=0 // pred_region
    _
  $region17: #{sage_forward.7} parent=0 // pred_fallthru
    _
  %p18 = scmp.eq.s32.totalorder 0, 0
  // Predicated region
  $region18: #{sage_forward.7} parent=0 // pred_check
    %p19 = pneg %p18
  $region19: #{sage_forward.7} parent=0 // pred_check_branch
    %21 = sbr.rel (%p19) target = $region21
  $region20: #{sage_forward.7} parent=0 // pred_region
    %22 = vst [vmem:[#allocation2] sm:$0xff] 0.0
    %23 = vst [vmem:[#allocation2 + $0x8] sm:$0xff] 0.0
    %24 = vst [vmem:[#allocation2 + $0x10] sm:$0xff] 0.0
    %25 = vst [vmem:[#allocation2 + $0x18] sm:$0xff] 0.0
    %26 = vst [vmem:[#allocation2 + $0x20] sm:$0xff] 0.0
    %27 = vst [vmem:[#allocation2 + $0x28] sm:$0xff] 0.0
    %28 = vst [vmem:[#allocation2 + $0x30] sm:$0xff] 0.0
    %29 = vst [vmem:[#allocation2 + $0x38] sm:$0xff] 0.0
    %30 = vst [vmem:[#allocation2 + $0x40] sm:$0xff] 0.0
    %31 = vst [vmem:[#allocation2 + $0x48] sm:$0xff] 0.0
    %32 = vst [vmem:[#allocation2 + $0x50] sm:$0xff] 0.0
    %33 = vst [vmem:[#allocation2 + $0x58] sm:$0xff] 0.0
    %34 = vst [vmem:[#allocation2 + $0x60] sm:$0xff] 0.0
    %35 = vst [vmem:[#allocation2 + $0x68] sm:$0xff] 0.0
    %36 = vst [vmem:[#allocation2 + $0x70] sm:$0xff] 0.0
    %37 = vst [vmem:[#allocation2 + $0x78] sm:$0xff] 0.0
  $region21: #{sage_forward.7} parent=0 // pred_fallthru
    _
  %v38 = vld [vmem:[#allocation2] sm:$0xff]
  %v39 = vld [vmem:[#allocation2 + $0x8] sm:$0xff]
  %v40 = vld [vmem:[#allocation2 + $0x10] sm:$0xff]
  %v41 = vld [vmem:[#allocation2 + $0x18] sm:$0xff]
  %v42 = vld [vmem:[#allocation2 + $0x20] sm:$0xff]
  %v43 = vld [vmem:[#allocation2 + $0x28] sm:$0xff]
  %v44 = vld [vmem:[#allocation2 + $0x30] sm:$0xff]
  %v45 = vld [vmem:[#allocation2 + $0x38] sm:$0xff]
  %v46 = vld [vmem:[#allocation2 + $0x40] sm:$0xff]
  %v47 = vld [vmem:[#allocation2 + $0x48] sm:$0xff]
  %v48 = vld [vmem:[#allocation2 + $0x50] sm:$0xff]
  %v49 = vld [vmem:[#allocation2 + $0x58] sm:$0xff]
  %v50 = vld [vmem:[#allocation2 + $0x60] sm:$0xff]
  %v51 = vld [vmem:[#allocation2 + $0x68] sm:$0xff]
  %v52 = vld [vmem:[#allocation2 + $0x70] sm:$0xff]
  %v53 = vld [vmem:[#allocation2 + $0x78] sm:$0xff]
  %v54 = vld [vmem:[%s0] sm:$0xf]
  %v55 = vld [vmem:[%s0 + $0x4] sm:$0xf]
  %v56 = vld [vmem:[%s0 + $0x8] sm:$0xf]
  %v57 = vld [vmem:[%s0 + $0xc] sm:$0xf]
  %v58 = vld [vmem:[%s0 + $0x10] sm:$0xf]
  %v59 = vld [vmem:[%s0 + $0x14] sm:$0xf]
  %v60 = vld [vmem:[%s0 + $0x18] sm:$0xf]
  %v61 = vld [vmem:[%s0 + $0x1c] sm:$0xf]
  %v62 = vld [vmem:[%s0 + $0x20] sm:$0xf]
  %v63 = vld [vmem:[%s0 + $0x24] sm:$0xf]
  %v64 = vld [vmem:[%s0 + $0x28] sm:$0xf]
  %v65 = vld [vmem:[%s0 + $0x2c] sm:$0xf]
  %v66 = vld [vmem:[%s0 + $0x30] sm:$0xf]
  %v67 = vld [vmem:[%s0 + $0x34] sm:$0xf]
  %v68 = vld [vmem:[%s0 + $0x38] sm:$0xf]
  %v69 = vld [vmem:[%s0 + $0x3c] sm:$0xf]
  %v70 = vld [vmem:[%s1] sm:$0xf]
  %v71 = vld [vmem:[%s1 + $0x4] sm:$0xf]
  %v72 = vld [vmem:[%s1 + $0x8] sm:$0xf]
  %v73 = vld [vmem:[%s1 + $0xc] sm:$0xf]
  %v74 = vld [vmem:[%s1 + $0x10] sm:$0xf]
  %v75 = vld [vmem:[%s1 + $0x14] sm:$0xf]
  %v76 = vld [vmem:[%s1 + $0x18] sm:$0xf]
  %v77 = vld [vmem:[%s1 + $0x1c] sm:$0xf]
  %v78 = vld [vmem:[%s1 + $0x20] sm:$0xf]
  %v79 = vld [vmem:[%s1 + $0x24] sm:$0xf]
  %v80 = vld [vmem:[%s1 + $0x28] sm:$0xf]
  %v81 = vld [vmem:[%s1 + $0x2c] sm:$0xf]
  %v82 = vld [vmem:[%s1 + $0x30] sm:$0xf]
  %v83 = vld [vmem:[%s1 + $0x34] sm:$0xf]
  %v84 = vld [vmem:[%s1 + $0x38] sm:$0xf]
  %v85 = vld [vmem:[%s1 + $0x3c] sm:$0xf]
  %v102 = vunpack.c.l.b16 %v54
  %v103 = vunpack.c.l.b16 %v55
  %v104 = vunpack.c.l.b16 %v56
  %v105 = vunpack.c.l.b16 %v57
  %v106 = vunpack.c.l.b16 %v58
  %v107 = vunpack.c.l.b16 %v59
  %v108 = vunpack.c.l.b16 %v60
  %v109 = vunpack.c.l.b16 %v61
  %v110 = vunpack.c.l.b16 %v62
  %v111 = vunpack.c.l.b16 %v63
  %v112 = vunpack.c.l.b16 %v64
  %v113 = vunpack.c.l.b16 %v65
  %v114 = vunpack.c.l.b16 %v66
  %v115 = vunpack.c.l.b16 %v67
  %v116 = vunpack.c.l.b16 %v68
  %v117 = vunpack.c.l.b16 %v69
  %v118 = vpack.c.b16 %v103, %v102
  %v119 = vpack.c.b16 %v105, %v104
  %v120 = vpack.c.b16 %v107, %v106
  %v121 = vpack.c.b16 %v109, %v108
  %v122 = vpack.c.b16 %v111, %v110
  %v123 = vpack.c.b16 %v113, %v112
  %v124 = vpack.c.b16 %v115, %v114
  %v125 = vpack.c.b16 %v117, %v116
  %v150 = vunpack.c.l.b16 %v70
  %v151 = vunpack.c.l.b16 %v71
  %v152 = vunpack.c.l.b16 %v72
  %v153 = vunpack.c.l.b16 %v73
  %v154 = vunpack.c.l.b16 %v74
  %v155 = vunpack.c.l.b16 %v75
  %v156 = vunpack.c.l.b16 %v76
  %v157 = vunpack.c.l.b16 %v77
  %v158 = vunpack.c.l.b16 %v78
  %v159 = vunpack.c.l.b16 %v79
  %v160 = vunpack.c.l.b16 %v80
  %v161 = vunpack.c.l.b16 %v81
  %v162 = vunpack.c.l.b16 %v82
  %v163 = vunpack.c.l.b16 %v83
  %v164 = vunpack.c.l.b16 %v84
  %v165 = vunpack.c.l.b16 %v85
  %v166 = vpack.c.b16 %v151, %v150
  %v167 = vpack.c.b16 %v153, %v152
  %v168 = vpack.c.b16 %v155, %v154
  %v169 = vpack.c.b16 %v157, %v156
  %v170 = vpack.c.b16 %v159, %v158
  %v171 = vpack.c.b16 %v161, %v160
  %v172 = vpack.c.b16 %v163, %v162
  %v173 = vpack.c.b16 %v165, %v164
  %182 = vmatprep.subr.bf16.mxu0 0
  %183 = vmatpush1.bf16.msra.mxu0 %v166
  %184 = vmatprep.subr.bf16.mxu0 0
  %185 = vmatpush1.bf16.msra.mxu0 %v167
  %186 = vmatprep.subr.bf16.mxu0 0
  %187 = vmatpush1.bf16.msra.mxu0 %v168
  %188 = vmatprep.subr.bf16.mxu0 0
  %189 = vmatpush1.bf16.msra.mxu0 %v169
  %190 = vmatprep.subr.bf16.mxu0 0
  %191 = vmatpush1.bf16.msra.mxu0 %v170
  %192 = vmatprep.subr.bf16.mxu0 0
  %193 = vmatpush1.bf16.msra.mxu0 %v171
  %194 = vmatprep.subr.bf16.mxu0 0
  %195 = vmatpush1.bf16.msra.mxu0 %v172
  %196 = vmatprep.subr.bf16.mxu0 0
  %197 = vmatpush1.bf16.msra.mxu0 %v173
  %198 = vmatprep.subr.bf16.mxu0 0
  %199 = vmatpush1.bf16.msra.mxu0 0
  %200 = vmatprep.subr.bf16.mxu0 0
  %201 = vmatpush1.bf16.msra.mxu0 0
  %202 = vmatprep.subr.bf16.mxu0 0
  %203 = vmatpush1.bf16.msra.mxu0 0
  %204 = vmatprep.subr.bf16.mxu0 0
  %205 = vmatpush1.bf16.msra.mxu0 0
  %206 = vmatprep.subr.bf16.mxu0 0
  %207 = vmatpush1.bf16.msra.mxu0 0
  %208 = vmatprep.subr.bf16.mxu0 0
  %209 = vmatpush1.bf16.msra.mxu0 0
  %210 = vmatprep.subr.bf16.mxu0 0
  %211 = vmatpush1.bf16.msra.mxu0 0
  %212 = vmatprep.subr.bf16.mxu0 0
  %213 = vmatpush1.bf16.msra.mxu0 0
  %214 = vmatprep.mubr.bf16.mxu0 0
  %215 = vmatmul.mubr.bf16.gmra.mrb[0].mxu0 %v118
  %v216 = vpop.f32.mrb[0].mxu0
  %v217 = vadd.f32 0.0, %v216
  %v218 = vpop.f32.mrb[0].mxu0
  %v219 = vpop.f32.mrb[0].mxu0
  %v220 = vadd.f32 0.0, %v219
  %v221 = vpop.f32.mrb[0].mxu0
  %222 = vmatprep.mubr.bf16.mxu0 0
  %223 = vmatmul.mubr.bf16.gmra.mrb[0].mxu0 %v119
  %v224 = vpop.f32.mrb[0].mxu0
  %v225 = vadd.f32 0.0, %v224
  %v226 = vpop.f32.mrb[0].mxu0
  %v227 = vpop.f32.mrb[0].mxu0
  %v228 = vadd.f32 0.0, %v227
  %v229 = vpop.f32.mrb[0].mxu0
  %230 = vmatprep.mubr.bf16.mxu0 0
  %231 = vmatmul.mubr.bf16.gmra.mrb[0].mxu0 %v120
  %v232 = vpop.f32.mrb[0].mxu0
  %v233 = vadd.f32 0.0, %v232
  %v234 = vpop.f32.mrb[0].mxu0
  %v235 = vpop.f32.mrb[0].mxu0
  %v236 = vadd.f32 0.0, %v235
  %v237 = vpop.f32.mrb[0].mxu0
  %238 = vmatprep.mubr.bf16.mxu0 0
  %239 = vmatmul.mubr.bf16.gmra.mrb[0].mxu0 %v121
  %v240 = vpop.f32.mrb[0].mxu0
  %v241 = vadd.f32 0.0, %v240
  %v242 = vpop.f32.mrb[0].mxu0
  %v243 = vpop.f32.mrb[0].mxu0
  %v244 = vadd.f32 0.0, %v243
  %v245 = vpop.f32.mrb[0].mxu0
  %246 = vmatprep.mubr.bf16.mxu0 0
  %247 = vmatmul.mubr.bf16.gmra.mrb[0].mxu0 %v122
  %v248 = vpop.f32.mrb[0].mxu0
  %v249 = vadd.f32 0.0, %v248
  %v250 = vpop.f32.mrb[0].mxu0
  %v251 = vpop.f32.mrb[0].mxu0
  %v252 = vadd.f32 0.0, %v251
  %v253 = vpop.f32.mrb[0].mxu0
  %254 = vmatprep.mubr.bf16.mxu0 0
  %255 = vmatmul.mubr.bf16.gmra.mrb[0].mxu0 %v123
  %v256 = vpop.f32.mrb[0].mxu0
  %v257 = vadd.f32 0.0, %v256
  %v258 = vpop.f32.mrb[0].mxu0
  %v259 = vpop.f32.mrb[0].mxu0
  %v260 = vadd.f32 0.0, %v259
  %v261 = vpop.f32.mrb[0].mxu0
  %262 = vmatprep.mubr.bf16.mxu0 0
  %263 = vmatmul.mubr.bf16.gmra.mrb[0].mxu0 %v124
  %v264 = vpop.f32.mrb[0].mxu0
  %v265 = vadd.f32 0.0, %v264
  %v266 = vpop.f32.mrb[0].mxu0
  %v267 = vpop.f32.mrb[0].mxu0
  %v268 = vadd.f32 0.0, %v267
  %v269 = vpop.f32.mrb[0].mxu0
  %270 = vmatprep.mubr.bf16.mxu0 0
  %271 = vmatmul.mubr.bf16.gmra.mrb[0].mxu0 %v125
  %v272 = vpop.f32.mrb[0].mxu0
  %v273 = vadd.f32 0.0, %v272
  %v274 = vpop.f32.mrb[0].mxu0
  %v275 = vpop.f32.mrb[0].mxu0
  %v276 = vadd.f32 0.0, %v275
  %v277 = vpop.f32.mrb[0].mxu0
  %278 = vdwg.mxu0
  %v279 = vadd.f32 %v38, %v217
  %v280 = vadd.f32 %v39, %v220
  %v281 = vadd.f32 %v40, %v225
  %v282 = vadd.f32 %v41, %v228
  %v283 = vadd.f32 %v42, %v233
  %v284 = vadd.f32 %v43, %v236
  %v285 = vadd.f32 %v44, %v241
  %v286 = vadd.f32 %v45, %v244
  %v287 = vadd.f32 %v46, %v249
  %v288 = vadd.f32 %v47, %v252
  %v289 = vadd.f32 %v48, %v257
  %v290 = vadd.f32 %v49, %v260
  %v291 = vadd.f32 %v50, %v265
  %v292 = vadd.f32 %v51, %v268
  %v293 = vadd.f32 %v52, %v273
  %v294 = vadd.f32 %v53, %v276
  %295 = vst [vmem:[#allocation2] sm:$0xff] %v279
  %296 = vst [vmem:[#allocation2 + $0x8] sm:$0xff] %v280
  %297 = vst [vmem:[#allocation2 + $0x10] sm:$0xff] %v281
  %298 = vst [vmem:[#allocation2 + $0x18] sm:$0xff] %v282
  %299 = vst [vmem:[#allocation2 + $0x20] sm:$0xff] %v283
  %300 = vst [vmem:[#allocation2 + $0x28] sm:$0xff] %v284
  %301 = vst [vmem:[#allocation2 + $0x30] sm:$0xff] %v285
  %302 = vst [vmem:[#allocation2 + $0x38] sm:$0xff] %v286
  %303 = vst [vmem:[#allocation2 + $0x40] sm:$0xff] %v287
  %304 = vst [vmem:[#allocation2 + $0x48] sm:$0xff] %v288
  %305 = vst [vmem:[#allocation2 + $0x50] sm:$0xff] %v289
  %306 = vst [vmem:[#allocation2 + $0x58] sm:$0xff] %v290
  %307 = vst [vmem:[#allocation2 + $0x60] sm:$0xff] %v291
  %308 = vst [vmem:[#allocation2 + $0x68] sm:$0xff] %v292
  %309 = vst [vmem:[#allocation2 + $0x70] sm:$0xff] %v293
  %310 = vst [vmem:[#allocation2 + $0x78] sm:$0xff] %v294
  // Predicated region
  $region22: #{sage_forward.7} parent=0 // pred_check
    %p311 = pneg %p18
  $region23: #{sage_forward.7} parent=0 // pred_check_branch
    %313 = sbr.rel (%p311) target = $region25
  $region24: #{sage_forward.7} parent=0 // pred_region
    %v314 = vld [vmem:[#allocation2] sm:$0xff]
    %v315 = vld [vmem:[#allocation2 + $0x8] sm:$0xff]
    %v316 = vld [vmem:[#allocation2 + $0x10] sm:$0xff]
    %v317 = vld [vmem:[#allocation2 + $0x18] sm:$0xff]
    %v318 = vld [vmem:[#allocation2 + $0x20] sm:$0xff]
    %v319 = vld [vmem:[#allocation2 + $0x28] sm:$0xff]
    %v320 = vld [vmem:[#allocation2 + $0x30] sm:$0xff]
    %v321 = vld [vmem:[#allocation2 + $0x38] sm:$0xff]
    %v322 = vld [vmem:[#allocation2 + $0x40] sm:$0xff]
    %v323 = vld [vmem:[#allocation2 + $0x48] sm:$0xff]
    %v324 = vld [vmem:[#allocation2 + $0x50] sm:$0xff]
    %v325 = vld [vmem:[#allocation2 + $0x58] sm:$0xff]
    %v326 = vld [vmem:[#allocation2 + $0x60] sm:$0xff]
    %v327 = vld [vmem:[#allocation2 + $0x68] sm:$0xff]
    %v328 = vld [vmem:[#allocation2 + $0x70] sm:$0xff]
    %v329 = vld [vmem:[#allocation2 + $0x78] sm:$0xff]
    %v330 = vld [vmem:[%s3] sm:$0xff]
    %v331 = vld [vmem:[%s3 + $0x8] sm:$0xff]
    %v332 = vld [vmem:[%s3 + $0x10] sm:$0xff]
    %v333 = vld [vmem:[%s3 + $0x18] sm:$0xff]
    %v334 = vld [vmem:[%s3 + $0x20] sm:$0xff]
    %v335 = vld [vmem:[%s3 + $0x28] sm:$0xff]
    %v336 = vld [vmem:[%s3 + $0x30] sm:$0xff]
    %v337 = vld [vmem:[%s3 + $0x38] sm:$0xff]
    %v338 = vld [vmem:[%s3 + $0x40] sm:$0xff]
    %v339 = vld [vmem:[%s3 + $0x48] sm:$0xff]
    %v340 = vld [vmem:[%s3 + $0x50] sm:$0xff]
    %v341 = vld [vmem:[%s3 + $0x58] sm:$0xff]
    %v342 = vld [vmem:[%s3 + $0x60] sm:$0xff]
    %v343 = vld [vmem:[%s3 + $0x68] sm:$0xff]
    %v344 = vld [vmem:[%s3 + $0x70] sm:$0xff]
    %v345 = vld [vmem:[%s3 + $0x78] sm:$0xff]
    %347 = vset.pattern.permute.xlu0 0
    %348 = vperm.xlu0 %347, %v330
    %v349 = vpop.permute.xlu0 %348
    %352 = vset.pattern.permute.xlu0 0
    %353 = vperm.xlu0 %352, %v331
    %v354 = vpop.permute.xlu0 %353
    %357 = vset.pattern.permute.xlu0 0
    %358 = vperm.xlu0 %357, %v332
    %v359 = vpop.permute.xlu0 %358
    %362 = vset.pattern.permute.xlu0 0
    %363 = vperm.xlu0 %362, %v333
    %v364 = vpop.permute.xlu0 %363
    %367 = vset.pattern.permute.xlu0 0
    %368 = vperm.xlu0 %367, %v334
    %v369 = vpop.permute.xlu0 %368
    %372 = vset.pattern.permute.xlu0 0
    %373 = vperm.xlu0 %372, %v335
    %v374 = vpop.permute.xlu0 %373
    %377 = vset.pattern.permute.xlu0 0
    %378 = vperm.xlu0 %377, %v336
    %v379 = vpop.permute.xlu0 %378
    %382 = vset.pattern.permute.xlu0 0
    %383 = vperm.xlu0 %382, %v337
    %v384 = vpop.permute.xlu0 %383
    %387 = vset.pattern.permute.xlu0 0
    %388 = vperm.xlu0 %387, %v338
    %v389 = vpop.permute.xlu0 %388
    %392 = vset.pattern.permute.xlu0 0
    %393 = vperm.xlu0 %392, %v339
    %v394 = vpop.permute.xlu0 %393
    %397 = vset.pattern.permute.xlu0 0
    %398 = vperm.xlu0 %397, %v340
    %v399 = vpop.permute.xlu0 %398
    %402 = vset.pattern.permute.xlu0 0
    %403 = vperm.xlu0 %402, %v341
    %v404 = vpop.permute.xlu0 %403
    %407 = vset.pattern.permute.xlu0 0
    %408 = vperm.xlu0 %407, %v342
    %v409 = vpop.permute.xlu0 %408
    %412 = vset.pattern.permute.xlu0 0
    %413 = vperm.xlu0 %412, %v343
    %v414 = vpop.permute.xlu0 %413
    %417 = vset.pattern.permute.xlu0 0
    %418 = vperm.xlu0 %417, %v344
    %v419 = vpop.permute.xlu0 %418
    %422 = vset.pattern.permute.xlu0 0
    %423 = vperm.xlu0 %422, %v345
    %v424 = vpop.permute.xlu0 %423
    %v426 = vmul.f32 %v314, %v349
    %v427 = vmul.f32 %v315, %v354
    %v428 = vmul.f32 %v316, %v359
    %v429 = vmul.f32 %v317, %v364
    %v430 = vmul.f32 %v318, %v369
    %v431 = vmul.f32 %v319, %v374
    %v432 = vmul.f32 %v320, %v379
    %v433 = vmul.f32 %v321, %v384
    %v434 = vmul.f32 %v322, %v389
    %v435 = vmul.f32 %v323, %v394
    %v436 = vmul.f32 %v324, %v399
    %v437 = vmul.f32 %v325, %v404
    %v438 = vmul.f32 %v326, %v409
    %v439 = vmul.f32 %v327, %v414
    %v440 = vmul.f32 %v328, %v419
    %v441 = vmul.f32 %v329, %v424
    %v442 = vld [vmem:[%s2] sm:$0xff]
    %v443 = vld [vmem:[%s2 + $0x8] sm:$0xff]
    %v444 = vld [vmem:[%s2 + $0x10] sm:$0xff]
    %v445 = vld [vmem:[%s2 + $0x18] sm:$0xff]
    %v446 = vld [vmem:[%s2 + $0x20] sm:$0xff]
    %v447 = vld [vmem:[%s2 + $0x28] sm:$0xff]
    %v448 = vld [vmem:[%s2 + $0x30] sm:$0xff]
    %v449 = vld [vmem:[%s2 + $0x38] sm:$0xff]
    %v450 = vld [vmem:[%s2 + $0x40] sm:$0xff]
    %v451 = vld [vmem:[%s2 + $0x48] sm:$0xff]
    %v452 = vld [vmem:[%s2 + $0x50] sm:$0xff]
    %v453 = vld [vmem:[%s2 + $0x58] sm:$0xff]
    %v454 = vld [vmem:[%s2 + $0x60] sm:$0xff]
    %v455 = vld [vmem:[%s2 + $0x68] sm:$0xff]
    %v456 = vld [vmem:[%s2 + $0x70] sm:$0xff]
    %v457 = vld [vmem:[%s2 + $0x78] sm:$0xff]
    %v458 = vadd.f32 %v426, %v442
    %v459 = vadd.f32 %v427, %v443
    %v460 = vadd.f32 %v428, %v444
    %v461 = vadd.f32 %v429, %v445
    %v462 = vadd.f32 %v430, %v446
    %v463 = vadd.f32 %v431, %v447
    %v464 = vadd.f32 %v432, %v448
    %v465 = vadd.f32 %v433, %v449
    %v466 = vadd.f32 %v434, %v450
    %v467 = vadd.f32 %v435, %v451
    %v468 = vadd.f32 %v436, %v452
    %v469 = vadd.f32 %v437, %v453
    %v470 = vadd.f32 %v438, %v454
    %v471 = vadd.f32 %v439, %v455
    %v472 = vadd.f32 %v440, %v456
    %v473 = vadd.f32 %v441, %v457
    %474 = vst [vmem:[%s4] sm:$0xff] %v458
    %475 = vst [vmem:[%s4 + $0x8] sm:$0xff] %v459
    %476 = vst [vmem:[%s4 + $0x10] sm:$0xff] %v460
    %477 = vst [vmem:[%s4 + $0x18] sm:$0xff] %v461
    %478 = vst [vmem:[%s4 + $0x20] sm:$0xff] %v462
    %479 = vst [vmem:[%s4 + $0x28] sm:$0xff] %v463
    %480 = vst [vmem:[%s4 + $0x30] sm:$0xff] %v464
    %481 = vst [vmem:[%s4 + $0x38] sm:$0xff] %v465
    %482 = vst [vmem:[%s4 + $0x40] sm:$0xff] %v466
    %483 = vst [vmem:[%s4 + $0x48] sm:$0xff] %v467
    %484 = vst [vmem:[%s4 + $0x50] sm:$0xff] %v468
    %485 = vst [vmem:[%s4 + $0x58] sm:$0xff] %v469
    %486 = vst [vmem:[%s4 + $0x60] sm:$0xff] %v470
    %487 = vst [vmem:[%s4 + $0x68] sm:$0xff] %v471
    %488 = vst [vmem:[%s4 + $0x70] sm:$0xff] %v472
    %489 = vst [vmem:[%s4 + $0x78] sm:$0xff] %v473
  $region25: #{sage_forward.7} parent=0 // pred_fallthru
    _
  // Predicated region
  $region26: #{sage_forward.7} parent=0 // pred_check
    _
  $region27: #{sage_forward.7} parent=0 // pred_check_branch
    %491 = sbr.rel (0) target = $region29
  $region28: #{sage_forward.7} parent=0 // pred_region
    _
  $region29: #{sage_forward.7} parent=0 // pred_fallthru
    _
  // Predicated region
  $region30: #{sage_forward.7} parent=0 // pred_check
    _
  $region31: #{sage_forward.7} parent=0 // pred_check_branch
    %493 = sbr.rel (0) target = $region33
  $region32: #{sage_forward.7} parent=0 // pred_region
    _
  $region33: #{sage_forward.7} parent=0 // pred_fallthru
    _

// kernel: sage_forward.5
$region0: #{sage_forward.5}
  #allocation0 [shape = 'u32[]', space=smem, size = 0x4, offset = 0x4, fixed_abs, tag = 'smem constant byte address 0x4 - core index']
  #allocation1 [shape = 'u32[144,128]{1,0:T(1,128)}', space=vmem, size = 0x12000, scoped, tag = 'internal scratch']
  #allocation2 [shape = 'f32[128,128]{1,0:T(8,128)}', space=vmem, size = 0x10000, scoped, tag = 'scratch operand']
  %s0 = inlined_call_operand.vmem [shape: bf16[128,128], index: 0, kind: input, shape index: {}]
  %s1 = inlined_call_operand.vmem [shape: bf16[128,128], index: 1, kind: input, shape index: {}]
  %s2 = inlined_call_operand.vmem [shape: f32[128,128], index: 2, kind: input, shape index: {}]
  %s3 = inlined_call_operand.vmem [shape: f32[128,1], index: 3, kind: input, shape index: {}]
  %s4 = inlined_call_operand.vmem [shape: bf16[128,128], index: 4, kind: input, shape index: {}]
  %s5 = inlined_call_operand.vmem [shape: bf16[128,128], index: 5, kind: input, shape index: {}]
  %s6 = inlined_call_operand.vmem [shape: f32[1,128], index: 6, kind: input, shape index: {}]
  %s7 = inlined_call_operand.vmem [shape: bf16[128,128], index: 7, kind: output, shape index: {0}]
  %s8 = inlined_call_operand.vmem [shape: f32[128,128], index: 8, kind: output, shape index: {1}]
  %9 = xla_tuple %s7, %s8
  %s10 = sld [smem:[#allocation0]]
  $region54: #{sage_forward.5} parent=0
    _
  %s12 = ssub.s32 1, %s10
  %s13 = scalar_select 0, %s12, %s10
  // Predicated region
  $region2: #{sage_forward.5} parent=0 // pred_check
    _
  $region3: #{sage_forward.5} parent=0 // pred_check_branch
    %15 = sbr.rel (0) target = $region5
  $region4: #{sage_forward.5} parent=0 // pred_region
    _
  $region5: #{sage_forward.5} parent=0 // pred_fallthru
    _
  // Predicated region
  $region6: #{sage_forward.5} parent=0 // pred_check
    _
  $region7: #{sage_forward.5} parent=0 // pred_check_branch
    %17 = sbr.rel (0) target = $region9
  $region8: #{sage_forward.5} parent=0 // pred_region
    _
  $region9: #{sage_forward.5} parent=0 // pred_fallthru
    _
  // Predicated region
  $region10: #{sage_forward.5} parent=0 // pred_check
    _
  $region11: #{sage_forward.5} parent=0 // pred_check_branch
    %19 = sbr.rel (0) target = $region13
  $region12: #{sage_forward.5} parent=0 // pred_region
    _
  $region13: #{sage_forward.5} parent=0 // pred_fallthru
    _
  // Predicated region
  $region14: #{sage_forward.5} parent=0 // pred_check
    _
  $region15: #{sage_forward.5} parent=0 // pred_check_branch
    %21 = sbr.rel (0) target = $region17
  $region16: #{sage_forward.5} parent=0 // pred_region
    _
  $region17: #{sage_forward.5} parent=0 // pred_fallthru
    _
  // Predicated region
  $region18: #{sage_forward.5} parent=0 // pred_check
    _
  $region19: #{sage_forward.5} parent=0 // pred_check_branch
    %23 = sbr.rel (0) target = $region21
  $region20: #{sage_forward.5} parent=0 // pred_region
    _
  $region21: #{sage_forward.5} parent=0 // pred_fallthru
    _
  // Predicated region
  $region22: #{sage_forward.5} parent=0 // pred_check
    _
  $region23: #{sage_forward.5} parent=0 // pred_check_branch
    %25 = sbr.rel (0) target = $region25
  $region24: #{sage_forward.5} parent=0 // pred_region
    _
  $region25: #{sage_forward.5} parent=0 // pred_fallthru
    _
  // Predicated region
  $region26: #{sage_forward.5} parent=0 // pred_check
    _
  $region27: #{sage_forward.5} parent=0 // pred_check_branch
    %27 = sbr.rel (0) target = $region29
  $region28: #{sage_forward.5} parent=0 // pred_region
    _
  $region29: #{sage_forward.5} parent=0 // pred_fallthru
    _
  %p29 = scmp.eq.s32.totalorder 0, 0
  // Predicated region
  $region30: #{sage_forward.5} parent=0 // pred_check
    %p30 = pneg %p29
  $region31: #{sage_forward.5} parent=0 // pred_check_branch
    %32 = sbr.rel (%p30) target = $region33
  $region32: #{sage_forward.5} parent=0 // pred_region
    %33 = vst [vmem:[#allocation2] sm:$0xff] 0.0
    %34 = vst [vmem:[#allocation2 + $0x8] sm:$0xff] 0.0
    %35 = vst [vmem:[#allocation2 + $0x10] sm:$0xff] 0.0
    %36 = vst [vmem:[#allocation2 + $0x18] sm:$0xff] 0.0
    %37 = vst [vmem:[#allocation2 + $0x20] sm:$0xff] 0.0
    %38 = vst [vmem:[#allocation2 + $0x28] sm:$0xff] 0.0
    %39 = vst [vmem:[#allocation2 + $0x30] sm:$0xff] 0.0
    %40 = vst [vmem:[#allocation2 + $0x38] sm:$0xff] 0.0
    %41 = vst [vmem:[#allocation2 + $0x40] sm:$0xff] 0.0
    %42 = vst [vmem:[#allocation2 + $0x48] sm:$0xff] 0.0
    %43 = vst [vmem:[#allocation2 + $0x50] sm:$0xff] 0.0
    %44 = vst [vmem:[#allocation2 + $0x58] sm:$0xff] 0.0
    %45 = vst [vmem:[#allocation2 + $0x60] sm:$0xff] 0.0
    %46 = vst [vmem:[#allocation2 + $0x68] sm:$0xff] 0.0
    %47 = vst [vmem:[#allocation2 + $0x70] sm:$0xff] 0.0
    %48 = vst [vmem:[#allocation2 + $0x78] sm:$0xff] 0.0
  $region33: #{sage_forward.5} parent=0 // pred_fallthru
    _
  %v49 = vld [vmem:[#allocation2] sm:$0xff]
  %v50 = vld [vmem:[#allocation2 + $0x8] sm:$0xff]
  %v51 = vld [vmem:[#allocation2 + $0x10] sm:$0xff]
  %v52 = vld [vmem:[#allocation2 + $0x18] sm:$0xff]
  %v53 = vld [vmem:[#allocation2 + $0x20] sm:$0xff]
  %v54 = vld [vmem:[#allocation2 + $0x28] sm:$0xff]
  %v55 = vld [vmem:[#allocation2 + $0x30] sm:$0xff]
  %v56 = vld [vmem:[#allocation2 + $0x38] sm:$0xff]
  %v57 = vld [vmem:[#allocation2 + $0x40] sm:$0xff]
  %v58 = vld [vmem:[#allocation2 + $0x48] sm:$0xff]
  %v59 = vld [vmem:[#allocation2 + $0x50] sm:$0xff]
  %v60 = vld [vmem:[#allocation2 + $0x58] sm:$0xff]
  %v61 = vld [vmem:[#allocation2 + $0x60] sm:$0xff]
  %v62 = vld [vmem:[#allocation2 + $0x68] sm:$0xff]
  %v63 = vld [vmem:[#allocation2 + $0x70] sm:$0xff]
  %v64 = vld [vmem:[#allocation2 + $0x78] sm:$0xff]
  %v65 = vld [vmem:[%s0] sm:$0xf]
  %v66 = vld [vmem:[%s0 + $0x4] sm:$0xf]
  %v67 = vld [vmem:[%s0 + $0x8] sm:$0xf]
  %v68 = vld [vmem:[%s0 + $0xc] sm:$0xf]
  %v69 = vld [vmem:[%s0 + $0x10] sm:$0xf]
  %v70 = vld [vmem:[%s0 + $0x14] sm:$0xf]
  %v71 = vld [vmem:[%s0 + $0x18] sm:$0xf]
  %v72 = vld [vmem:[%s0 + $0x1c] sm:$0xf]
  %v73 = vld [vmem:[%s0 + $0x20] sm:$0xf]
  %v74 = vld [vmem:[%s0 + $0x24] sm:$0xf]
  %v75 = vld [vmem:[%s0 + $0x28] sm:$0xf]
  %v76 = vld [vmem:[%s0 + $0x2c] sm:$0xf]
  %v77 = vld [vmem:[%s0 + $0x30] sm:$0xf]
  %v78 = vld [vmem:[%s0 + $0x34] sm:$0xf]
  %v79 = vld [vmem:[%s0 + $0x38] sm:$0xf]
  %v80 = vld [vmem:[%s0 + $0x3c] sm:$0xf]
  %v81 = vld [vmem:[%s1] sm:$0xf]
  %v82 = vld [vmem:[%s1 + $0x4] sm:$0xf]
  %v83 = vld [vmem:[%s1 + $0x8] sm:$0xf]
  %v84 = vld [vmem:[%s1 + $0xc] sm:$0xf]
  %v85 = vld [vmem:[%s1 + $0x10] sm:$0xf]
  %v86 = vld [vmem:[%s1 + $0x14] sm:$0xf]
  %v87 = vld [vmem:[%s1 + $0x18] sm:$0xf]
  %v88 = vld [vmem:[%s1 + $0x1c] sm:$0xf]
  %v89 = vld [vmem:[%s1 + $0x20] sm:$0xf]
  %v90 = vld [vmem:[%s1 + $0x24] sm:$0xf]
  %v91 = vld [vmem:[%s1 + $0x28] sm:$0xf]
  %v92 = vld [vmem:[%s1 + $0x2c] sm:$0xf]
  %v93 = vld [vmem:[%s1 + $0x30] sm:$0xf]
  %v94 = vld [vmem:[%s1 + $0x34] sm:$0xf]
  %v95 = vld [vmem:[%s1 + $0x38] sm:$0xf]
  %v96 = vld [vmem:[%s1 + $0x3c] sm:$0xf]
  %v113 = vunpack.c.l.b16 %v65
  %v114 = vunpack.c.l.b16 %v66
  %v115 = vunpack.c.l.b16 %v67
  %v116 = vunpack.c.l.b16 %v68
  %v117 = vunpack.c.l.b16 %v69
  %v118 = vunpack.c.l.b16 %v70
  %v119 = vunpack.c.l.b16 %v71
  %v120 = vunpack.c.l.b16 %v72
  %v121 = vunpack.c.l.b16 %v73
  %v122 = vunpack.c.l.b16 %v74
  %v123 = vunpack.c.l.b16 %v75
  %v124 = vunpack.c.l.b16 %v76
  %v125 = vunpack.c.l.b16 %v77
  %v126 = vunpack.c.l.b16 %v78
  %v127 = vunpack.c.l.b16 %v79
  %v128 = vunpack.c.l.b16 %v80
  %v129 = vpack.c.b16 %v114, %v113
  %v130 = vpack.c.b16 %v116, %v115
  %v131 = vpack.c.b16 %v118, %v117
  %v132 = vpack.c.b16 %v120, %v119
  %v133 = vpack.c.b16 %v122, %v121
  %v134 = vpack.c.b16 %v124, %v123
  %v135 = vpack.c.b16 %v126, %v125
  %v136 = vpack.c.b16 %v128, %v127
  %v161 = vunpack.c.l.b16 %v81
  %v162 = vunpack.c.l.b16 %v82
  %v163 = vunpack.c.l.b16 %v83
  %v164 = vunpack.c.l.b16 %v84
  %v165 = vunpack.c.l.b16 %v85
  %v166 = vunpack.c.l.b16 %v86
  %v167 = vunpack.c.l.b16 %v87
  %v168 = vunpack.c.l.b16 %v88
  %v169 = vunpack.c.l.b16 %v89
  %v170 = vunpack.c.l.b16 %v90
  %v171 = vunpack.c.l.b16 %v91
  %v172 = vunpack.c.l.b16 %v92
  %v173 = vunpack.c.l.b16 %v93
  %v174 = vunpack.c.l.b16 %v94
  %v175 = vunpack.c.l.b16 %v95
  %v176 = vunpack.c.l.b16 %v96
  %v177 = vpack.c.b16 %v162, %v161
  %v178 = vpack.c.b16 %v164, %v163
  %v179 = vpack.c.b16 %v166, %v165
  %v180 = vpack.c.b16 %v168, %v167
  %v181 = vpack.c.b16 %v170, %v169
  %v182 = vpack.c.b16 %v172, %v171
  %v183 = vpack.c.b16 %v174, %v173
  %v184 = vpack.c.b16 %v176, %v175
  %193 = vmatprep.subr.bf16.mxu0 0
  %194 = vmatpush1.bf16.msra.mxu0 %v177
  %195 = vmatprep.subr.bf16.mxu0 0
  %196 = vmatpush1.bf16.msra.mxu0 %v178
  %197 = vmatprep.subr.bf16.mxu0 0
  %198 = vmatpush1.bf16.msra.mxu0 %v179
  %199 = vmatprep.subr.bf16.mxu0 0
  %200 = vmatpush1.bf16.msra.mxu0 %v180
  %201 = vmatprep.subr.bf16.mxu0 0
  %202 = vmatpush1.bf16.msra.mxu0 %v181
  %203 = vmatprep.subr.bf16.mxu0 0
  %204 = vmatpush1.bf16.msra.mxu0 %v182
  %205 = vmatprep.subr.bf16.mxu0 0
  %206 = vmatpush1.bf16.msra.mxu0 %v183
  %207 = vmatprep.subr.bf16.mxu0 0
  %208 = vmatpush1.bf16.msra.mxu0 %v184
  %209 = vmatprep.subr.bf16.mxu0 0
  %210 = vmatpush1.bf16.msra.mxu0 0
  %211 = vmatprep.subr.bf16.mxu0 0
  %212 = vmatpush1.bf16.msra.mxu0 0
  %213 = vmatprep.subr.bf16.mxu0 0
  %214 = vmatpush1.bf16.msra.mxu0 0
  %215 = vmatprep.subr.bf16.mxu0 0
  %216 = vmatpush1.bf16.msra.mxu0 0
  %217 = vmatprep.subr.bf16.mxu0 0
  %218 = vmatpush1.bf16.msra.mxu0 0
  %219 = vmatprep.subr.bf16.mxu0 0
  %220 = vmatpush1.bf16.msra.mxu0 0
  %221 = vmatprep.subr.bf16.mxu0 0
  %222 = vmatpush1.bf16.msra.mxu0 0
  %223 = vmatprep.subr.bf16.mxu0 0
  %224 = vmatpush1.bf16.msra.mxu0 0
  %225 = vmatprep.mubr.bf16.mxu0 0
  %226 = vmatmul.mubr.bf16.gmra.mrb[0].mxu0 %v129
  %v227 = vpop.f32.mrb[0].mxu0
  %v228 = vadd.f32 0.0, %v227
  %v229 = vpop.f32.mrb[0].mxu0
  %v230 = vpop.f32.mrb[0].mxu0
  %v231 = vadd.f32 0.0, %v230
  %v232 = vpop.f32.mrb[0].mxu0
  %233 = vmatprep.mubr.bf16.mxu0 0
  %234 = vmatmul.mubr.bf16.gmra.mrb[0].mxu0 %v130
  %v235 = vpop.f32.mrb[0].mxu0
  %v236 = vadd.f32 0.0, %v235
  %v237 = vpop.f32.mrb[0].mxu0
  %v238 = vpop.f32.mrb[0].mxu0
  %v239 = vadd.f32 0.0, %v238
  %v240 = vpop.f32.mrb[0].mxu0
  %241 = vmatprep.mubr.bf16.mxu0 0
  %242 = vmatmul.mubr.bf16.gmra.mrb[0].mxu0 %v131
  %v243 = vpop.f32.mrb[0].mxu0
  %v244 = vadd.f32 0.0, %v243
  %v245 = vpop.f32.mrb[0].mxu0
  %v246 = vpop.f32.mrb[0].mxu0
  %v247 = vadd.f32 0.0, %v246
  %v248 = vpop.f32.mrb[0].mxu0
  %249 = vmatprep.mubr.bf16.mxu0 0
  %250 = vmatmul.mubr.bf16.gmra.mrb[0].mxu0 %v132
  %v251 = vpop.f32.mrb[0].mxu0
  %v252 = vadd.f32 0.0, %v251
  %v253 = vpop.f32.mrb[0].mxu0
  %v254 = vpop.f32.mrb[0].mxu0
  %v255 = vadd.f32 0.0, %v254
  %v256 = vpop.f32.mrb[0].mxu0
  %257 = vmatprep.mubr.bf16.mxu0 0
  %258 = vmatmul.mubr.bf16.gmra.mrb[0].mxu0 %v133
  %v259 = vpop.f32.mrb[0].mxu0
  %v260 = vadd.f32 0.0, %v259
  %v261 = vpop.f32.mrb[0].mxu0
  %v262 = vpop.f32.mrb[0].mxu0
  %v263 = vadd.f32 0.0, %v262
  %v264 = vpop.f32.mrb[0].mxu0
  %265 = vmatprep.mubr.bf16.mxu0 0
  %266 = vmatmul.mubr.bf16.gmra.mrb[0].mxu0 %v134
  %v267 = vpop.f32.mrb[0].mxu0
  %v268 = vadd.f32 0.0, %v267
  %v269 = vpop.f32.mrb[0].mxu0
  %v270 = vpop.f32.mrb[0].mxu0
  %v271 = vadd.f32 0.0, %v270
  %v272 = vpop.f32.mrb[0].mxu0
  %273 = vmatprep.mubr.bf16.mxu0 0
  %274 = vmatmul.mubr.bf16.gmra.mrb[0].mxu0 %v135
  %v275 = vpop.f32.mrb[0].mxu0
  %v276 = vadd.f32 0.0, %v275
  %v277 = vpop.f32.mrb[0].mxu0
  %v278 = vpop.f32.mrb[0].mxu0
  %v279 = vadd.f32 0.0, %v278
  %v280 = vpop.f32.mrb[0].mxu0
  %281 = vmatprep.mubr.bf16.mxu0 0
  %282 = vmatmul.mubr.bf16.gmra.mrb[0].mxu0 %v136
  %v283 = vpop.f32.mrb[0].mxu0
  %v284 = vadd.f32 0.0, %v283
  %v285 = vpop.f32.mrb[0].mxu0
  %v286 = vpop.f32.mrb[0].mxu0
  %v287 = vadd.f32 0.0, %v286
  %v288 = vpop.f32.mrb[0].mxu0
  %289 = vdwg.mxu0
  %v290 = vadd.f32 %v49, %v228
  %v291 = vadd.f32 %v50, %v231
  %v292 = vadd.f32 %v51, %v236
  %v293 = vadd.f32 %v52, %v239
  %v294 = vadd.f32 %v53, %v244
  %v295 = vadd.f32 %v54, %v247
  %v296 = vadd.f32 %v55, %v252
  %v297 = vadd.f32 %v56, %v255
  %v298 = vadd.f32 %v57, %v260
  %v299 = vadd.f32 %v58, %v263
  %v300 = vadd.f32 %v59, %v268
  %v301 = vadd.f32 %v60, %v271
  %v302 = vadd.f32 %v61, %v276
  %v303 = vadd.f32 %v62, %v279
  %v304 = vadd.f32 %v63, %v284
  %v305 = vadd.f32 %v64, %v287
  %306 = vst [vmem:[#allocation2] sm:$0xff] %v290
  %307 = vst [vmem:[#allocation2 + $0x8] sm:$0xff] %v291
  %308 = vst [vmem:[#allocation2 + $0x10] sm:$0xff] %v292
  %309 = vst [vmem:[#allocation2 + $0x18] sm:$0xff] %v293
  %310 = vst [vmem:[#allocation2 + $0x20] sm:$0xff] %v294
  %311 = vst [vmem:[#allocation2 + $0x28] sm:$0xff] %v295
  %312 = vst [vmem:[#allocation2 + $0x30] sm:$0xff] %v296
  %313 = vst [vmem:[#allocation2 + $0x38] sm:$0xff] %v297
  %314 = vst [vmem:[#allocation2 + $0x40] sm:$0xff] %v298
  %315 = vst [vmem:[#allocation2 + $0x48] sm:$0xff] %v299
  %316 = vst [vmem:[#allocation2 + $0x50] sm:$0xff] %v300
  %317 = vst [vmem:[#allocation2 + $0x58] sm:$0xff] %v301
  %318 = vst [vmem:[#allocation2 + $0x60] sm:$0xff] %v302
  %319 = vst [vmem:[#allocation2 + $0x68] sm:$0xff] %v303
  %320 = vst [vmem:[#allocation2 + $0x70] sm:$0xff] %v304
  %321 = vst [vmem:[#allocation2 + $0x78] sm:$0xff] %v305
  // Predicated region
  $region34: #{sage_forward.5} parent=0 // pred_check
    %p322 = pneg %p29
  $region35: #{sage_forward.5} parent=0 // pred_check_branch
    %324 = sbr.rel (%p322) target = $region37
  $region36: #{sage_forward.5} parent=0 // pred_region
    %v325 = vld [vmem:[#allocation2] sm:$0xff]
    %v326 = vld [vmem:[#allocation2 + $0x8] sm:$0xff]
    %v327 = vld [vmem:[#allocation2 + $0x10] sm:$0xff]
    %v328 = vld [vmem:[#allocation2 + $0x18] sm:$0xff]
    %v329 = vld [vmem:[#allocation2 + $0x20] sm:$0xff]
    %v330 = vld [vmem:[#allocation2 + $0x28] sm:$0xff]
    %v331 = vld [vmem:[#allocation2 + $0x30] sm:$0xff]
    %v332 = vld [vmem:[#allocation2 + $0x38] sm:$0xff]
    %v333 = vld [vmem:[#allocation2 + $0x40] sm:$0xff]
    %v334 = vld [vmem:[#allocation2 + $0x48] sm:$0xff]
    %v335 = vld [vmem:[#allocation2 + $0x50] sm:$0xff]
    %v336 = vld [vmem:[#allocation2 + $0x58] sm:$0xff]
    %v337 = vld [vmem:[#allocation2 + $0x60] sm:$0xff]
    %v338 = vld [vmem:[#allocation2 + $0x68] sm:$0xff]
    %v339 = vld [vmem:[#allocation2 + $0x70] sm:$0xff]
    %v340 = vld [vmem:[#allocation2 + $0x78] sm:$0xff]
    %v341 = vld [vmem:[%s3] sm:$0xff]
    %v342 = vld [vmem:[%s3 + $0x8] sm:$0xff]
    %v343 = vld [vmem:[%s3 + $0x10] sm:$0xff]
    %v344 = vld [vmem:[%s3 + $0x18] sm:$0xff]
    %v345 = vld [vmem:[%s3 + $0x20] sm:$0xff]
    %v346 = vld [vmem:[%s3 + $0x28] sm:$0xff]
    %v347 = vld [vmem:[%s3 + $0x30] sm:$0xff]
    %v348 = vld [vmem:[%s3 + $0x38] sm:$0xff]
    %v349 = vld [vmem:[%s3 + $0x40] sm:$0xff]
    %v350 = vld [vmem:[%s3 + $0x48] sm:$0xff]
    %v351 = vld [vmem:[%s3 + $0x50] sm:$0xff]
    %v352 = vld [vmem:[%s3 + $0x58] sm:$0xff]
    %v353 = vld [vmem:[%s3 + $0x60] sm:$0xff]
    %v354 = vld [vmem:[%s3 + $0x68] sm:$0xff]
    %v355 = vld [vmem:[%s3 + $0x70] sm:$0xff]
    %v356 = vld [vmem:[%s3 + $0x78] sm:$0xff]
    %358 = vset.pattern.permute.xlu0 0
    %359 = vperm.xlu0 %358, %v341
    %v360 = vpop.permute.xlu0 %359
    %363 = vset.pattern.permute.xlu0 0
    %364 = vperm.xlu0 %363, %v342
    %v365 = vpop.permute.xlu0 %364
    %368 = vset.pattern.permute.xlu0 0
    %369 = vperm.xlu0 %368, %v343
    %v370 = vpop.permute.xlu0 %369
    %373 = vset.pattern.permute.xlu0 0
    %374 = vperm.xlu0 %373, %v344
    %v375 = vpop.permute.xlu0 %374
    %378 = vset.pattern.permute.xlu0 0
    %379 = vperm.xlu0 %378, %v345
    %v380 = vpop.permute.xlu0 %379
    %383 = vset.pattern.permute.xlu0 0
    %384 = vperm.xlu0 %383, %v346
    %v385 = vpop.permute.xlu0 %384
    %388 = vset.pattern.permute.xlu0 0
    %389 = vperm.xlu0 %388, %v347
    %v390 = vpop.permute.xlu0 %389
    %393 = vset.pattern.permute.xlu0 0
    %394 = vperm.xlu0 %393, %v348
    %v395 = vpop.permute.xlu0 %394
    %398 = vset.pattern.permute.xlu0 0
    %399 = vperm.xlu0 %398, %v349
    %v400 = vpop.permute.xlu0 %399
    %403 = vset.pattern.permute.xlu0 0
    %404 = vperm.xlu0 %403, %v350
    %v405 = vpop.permute.xlu0 %404
    %408 = vset.pattern.permute.xlu0 0
    %409 = vperm.xlu0 %408, %v351
    %v410 = vpop.permute.xlu0 %409
    %413 = vset.pattern.permute.xlu0 0
    %414 = vperm.xlu0 %413, %v352
    %v415 = vpop.permute.xlu0 %414
    %418 = vset.pattern.permute.xlu0 0
    %419 = vperm.xlu0 %418, %v353
    %v420 = vpop.permute.xlu0 %419
    %423 = vset.pattern.permute.xlu0 0
    %424 = vperm.xlu0 %423, %v354
    %v425 = vpop.permute.xlu0 %424
    %428 = vset.pattern.permute.xlu0 0
    %429 = vperm.xlu0 %428, %v355
    %v430 = vpop.permute.xlu0 %429
    %433 = vset.pattern.permute.xlu0 0
    %434 = vperm.xlu0 %433, %v356
    %v435 = vpop.permute.xlu0 %434
    %v437 = vmul.f32 %v325, %v360
    %v438 = vmul.f32 %v326, %v365
    %v439 = vmul.f32 %v327, %v370
    %v440 = vmul.f32 %v328, %v375
    %v441 = vmul.f32 %v329, %v380
    %v442 = vmul.f32 %v330, %v385
    %v443 = vmul.f32 %v331, %v390
    %v444 = vmul.f32 %v332, %v395
    %v445 = vmul.f32 %v333, %v400
    %v446 = vmul.f32 %v334, %v405
    %v447 = vmul.f32 %v335, %v410
    %v448 = vmul.f32 %v336, %v415
    %v449 = vmul.f32 %v337, %v420
    %v450 = vmul.f32 %v338, %v425
    %v451 = vmul.f32 %v339, %v430
    %v452 = vmul.f32 %v340, %v435
    %v453 = vld [vmem:[%s2] sm:$0xff]
    %v454 = vld [vmem:[%s2 + $0x8] sm:$0xff]
    %v455 = vld [vmem:[%s2 + $0x10] sm:$0xff]
    %v456 = vld [vmem:[%s2 + $0x18] sm:$0xff]
    %v457 = vld [vmem:[%s2 + $0x20] sm:$0xff]
    %v458 = vld [vmem:[%s2 + $0x28] sm:$0xff]
    %v459 = vld [vmem:[%s2 + $0x30] sm:$0xff]
    %v460 = vld [vmem:[%s2 + $0x38] sm:$0xff]
    %v461 = vld [vmem:[%s2 + $0x40] sm:$0xff]
    %v462 = vld [vmem:[%s2 + $0x48] sm:$0xff]
    %v463 = vld [vmem:[%s2 + $0x50] sm:$0xff]
    %v464 = vld [vmem:[%s2 + $0x58] sm:$0xff]
    %v465 = vld [vmem:[%s2 + $0x60] sm:$0xff]
    %v466 = vld [vmem:[%s2 + $0x68] sm:$0xff]
    %v467 = vld [vmem:[%s2 + $0x70] sm:$0xff]
    %v468 = vld [vmem:[%s2 + $0x78] sm:$0xff]
    %v469 = vadd.f32 %v437, %v453
    %v470 = vadd.f32 %v438, %v454
    %v471 = vadd.f32 %v439, %v455
    %v472 = vadd.f32 %v440, %v456
    %v473 = vadd.f32 %v441, %v457
    %v474 = vadd.f32 %v442, %v458
    %v475 = vadd.f32 %v443, %v459
    %v476 = vadd.f32 %v444, %v460
    %v477 = vadd.f32 %v445, %v461
    %v478 = vadd.f32 %v446, %v462
    %v479 = vadd.f32 %v447, %v463
    %v480 = vadd.f32 %v448, %v464
    %v481 = vadd.f32 %v449, %v465
    %v482 = vadd.f32 %v450, %v466
    %v483 = vadd.f32 %v451, %v467
    %v484 = vadd.f32 %v452, %v468
    %v485 = vmax.f32 %v469, 0.0
    %v486 = vmax.f32 %v470, 0.0
    %v487 = vmax.f32 %v471, 0.0
    %v488 = vmax.f32 %v472, 0.0
    %v489 = vmax.f32 %v473, 0.0
    %v490 = vmax.f32 %v474, 0.0
    %v491 = vmax.f32 %v475, 0.0
    %v492 = vmax.f32 %v476, 0.0
    %v493 = vmax.f32 %v477, 0.0
    %v494 = vmax.f32 %v478, 0.0
    %v495 = vmax.f32 %v479, 0.0
    %v496 = vmax.f32 %v480, 0.0
    %v497 = vmax.f32 %v481, 0.0
    %v498 = vmax.f32 %v482, 0.0
    %v499 = vmax.f32 %v483, 0.0
    %v500 = vmax.f32 %v484, 0.0
    %v501 = vpack.c.bf16 %v486, %v485
    %v502 = vpack.c.bf16 %v488, %v487
    %v503 = vpack.c.bf16 %v490, %v489
    %v504 = vpack.c.bf16 %v492, %v491
    %v505 = vpack.c.bf16 %v494, %v493
    %v506 = vpack.c.bf16 %v496, %v495
    %v507 = vpack.c.bf16 %v498, %v497
    %v508 = vpack.c.bf16 %v500, %v499
    %v509 = vld [vmem:[%s4] sm:$0xf]
    %v510 = vld [vmem:[%s4 + $0x4] sm:$0xf]
    %v511 = vld [vmem:[%s4 + $0x8] sm:$0xf]
    %v512 = vld [vmem:[%s4 + $0xc] sm:$0xf]
    %v513 = vld [vmem:[%s4 + $0x10] sm:$0xf]
    %v514 = vld [vmem:[%s4 + $0x14] sm:$0xf]
    %v515 = vld [vmem:[%s4 + $0x18] sm:$0xf]
    %v516 = vld [vmem:[%s4 + $0x1c] sm:$0xf]
    %v517 = vld [vmem:[%s4 + $0x20] sm:$0xf]
    %v518 = vld [vmem:[%s4 + $0x24] sm:$0xf]
    %v519 = vld [vmem:[%s4 + $0x28] sm:$0xf]
    %v520 = vld [vmem:[%s4 + $0x2c] sm:$0xf]
    %v521 = vld [vmem:[%s4 + $0x30] sm:$0xf]
    %v522 = vld [vmem:[%s4 + $0x34] sm:$0xf]
    %v523 = vld [vmem:[%s4 + $0x38] sm:$0xf]
    %v524 = vld [vmem:[%s4 + $0x3c] sm:$0xf]
    %v541 = vunpack.c.l.b16 %v509
    %v542 = vunpack.c.l.b16 %v510
    %v543 = vunpack.c.l.b16 %v511
    %v544 = vunpack.c.l.b16 %v512
    %v545 = vunpack.c.l.b16 %v513
    %v546 = vunpack.c.l.b16 %v514
    %v547 = vunpack.c.l.b16 %v515
    %v548 = vunpack.c.l.b16 %v516
    %v549 = vunpack.c.l.b16 %v517
    %v550 = vunpack.c.l.b16 %v518
    %v551 = vunpack.c.l.b16 %v519
    %v552 = vunpack.c.l.b16 %v520
    %v553 = vunpack.c.l.b16 %v521
    %v554 = vunpack.c.l.b16 %v522
    %v555 = vunpack.c.l.b16 %v523
    %v556 = vunpack.c.l.b16 %v524
    %v557 = vpack.c.b16 %v542, %v541
    %v558 = vpack.c.b16 %v544, %v543
    %v559 = vpack.c.b16 %v546, %v545
    %v560 = vpack.c.b16 %v548, %v547
    %v561 = vpack.c.b16 %v550, %v549
    %v562 = vpack.c.b16 %v552, %v551
    %v563 = vpack.c.b16 %v554, %v553
    %v564 = vpack.c.b16 %v556, %v555
    %573 = vmatprep.subr.bf16.mxu0 0
    %574 = vmatpush1.bf16.msra.mxu0 %v557
    %575 = vmatprep.subr.bf16.mxu0 0
    %576 = vmatpush1.bf16.msra.mxu0 %v558
    %577 = vmatprep.subr.bf16.mxu0 0
    %578 = vmatpush1.bf16.msra.mxu0 %v559
    %579 = vmatprep.subr.bf16.mxu0 0
    %580 = vmatpush1.bf16.msra.mxu0 %v560
    %581 = vmatprep.subr.bf16.mxu0 0
    %582 = vmatpush1.bf16.msra.mxu0 %v561
    %583 = vmatprep.subr.bf16.mxu0 0
    %584 = vmatpush1.bf16.msra.mxu0 %v562
    %585 = vmatprep.subr.bf16.mxu0 0
    %586 = vmatpush1.bf16.msra.mxu0 %v563
    %587 = vmatprep.subr.bf16.mxu0 0
    %588 = vmatpush1.bf16.msra.mxu0 %v564
    %589 = vmatprep.subr.bf16.mxu0 0
    %590 = vmatpush1.bf16.msra.mxu0 0
    %591 = vmatprep.subr.bf16.mxu0 0
    %592 = vmatpush1.bf16.msra.mxu0 0
    %593 = vmatprep.subr.bf16.mxu0 0
    %594 = vmatpush1.bf16.msra.mxu0 0
    %595 = vmatprep.subr.bf16.mxu0 0
    %596 = vmatpush1.bf16.msra.mxu0 0
    %597 = vmatprep.subr.bf16.mxu0 0
    %598 = vmatpush1.bf16.msra.mxu0 0
    %599 = vmatprep.subr.bf16.mxu0 0
    %600 = vmatpush1.bf16.msra.mxu0 0
    %601 = vmatprep.subr.bf16.mxu0 0
    %602 = vmatpush1.bf16.msra.mxu0 0
    %603 = vmatprep.subr.bf16.mxu0 0
    %604 = vmatpush1.bf16.msra.mxu0 0
    %605 = vmatprep.mubr.bf16.mxu0 0
    %606 = vmatmul.mubr.bf16.gmra.mrb[0].mxu0 %v501
    %v607 = vpop.f32.mrb[0].mxu0
    %v608 = vadd.f32 0.0, %v607
    %v609 = vpop.f32.mrb[0].mxu0
    %v610 = vpop.f32.mrb[0].mxu0
    %v611 = vadd.f32 0.0, %v610
    %v612 = vpop.f32.mrb[0].mxu0
    %613 = vmatprep.mubr.bf16.mxu0 0
    %614 = vmatmul.mubr.bf16.gmra.mrb[0].mxu0 %v502
    %v615 = vpop.f32.mrb[0].mxu0
    %v616 = vadd.f32 0.0, %v615
    %v617 = vpop.f32.mrb[0].mxu0
    %v618 = vpop.f32.mrb[0].mxu0
    %v619 = vadd.f32 0.0, %v618
    %v620 = vpop.f32.mrb[0].mxu0
    %621 = vmatprep.mubr.bf16.mxu0 0
    %622 = vmatmul.mubr.bf16.gmra.mrb[0].mxu0 %v503
    %v623 = vpop.f32.mrb[0].mxu0
    %v624 = vadd.f32 0.0, %v623
    %v625 = vpop.f32.mrb[0].mxu0
    %v626 = vpop.f32.mrb[0].mxu0
    %v627 = vadd.f32 0.0, %v626
    %v628 = vpop.f32.mrb[0].mxu0
    %629 = vmatprep.mubr.bf16.mxu0 0
    %630 = vmatmul.mubr.bf16.gmra.mrb[0].mxu0 %v504
    %v631 = vpop.f32.mrb[0].mxu0
    %v632 = vadd.f32 0.0, %v631
    %v633 = vpop.f32.mrb[0].mxu0
    %v634 = vpop.f32.mrb[0].mxu0
    %v635 = vadd.f32 0.0, %v634
    %v636 = vpop.f32.mrb[0].mxu0
    %637 = vmatprep.mubr.bf16.mxu0 0
    %638 = vmatmul.mubr.bf16.gmra.mrb[0].mxu0 %v505
    %v639 = vpop.f32.mrb[0].mxu0
    %v640 = vadd.f32 0.0, %v639
    %v641 = vpop.f32.mrb[0].mxu0
    %v642 = vpop.f32.mrb[0].mxu0
    %v643 = vadd.f32 0.0, %v642
    %v644 = vpop.f32.mrb[0].mxu0
    %645 = vmatprep.mubr.bf16.mxu0 0
    %646 = vmatmul.mubr.bf16.gmra.mrb[0].mxu0 %v506
    %v647 = vpop.f32.mrb[0].mxu0
    %v648 = vadd.f32 0.0, %v647
    %v649 = vpop.f32.mrb[0].mxu0
    %v650 = vpop.f32.mrb[0].mxu0
    %v651 = vadd.f32 0.0, %v650
    %v652 = vpop.f32.mrb[0].mxu0
    %653 = vmatprep.mubr.bf16.mxu0 0
    %654 = vmatmul.mubr.bf16.gmra.mrb[0].mxu0 %v507
    %v655 = vpop.f32.mrb[0].mxu0
    %v656 = vadd.f32 0.0, %v655
    %v657 = vpop.f32.mrb[0].mxu0
    %v658 = vpop.f32.mrb[0].mxu0
    %v659 = vadd.f32 0.0, %v658
    %v660 = vpop.f32.mrb[0].mxu0
    %661 = vmatprep.mubr.bf16.mxu0 0
    %662 = vmatmul.mubr.bf16.gmra.mrb[0].mxu0 %v508
    %v663 = vpop.f32.mrb[0].mxu0
    %v664 = vadd.f32 0.0, %v663
    %v665 = vpop.f32.mrb[0].mxu0
    %v666 = vpop.f32.mrb[0].mxu0
    %v667 = vadd.f32 0.0, %v666
    %v668 = vpop.f32.mrb[0].mxu0
    %669 = vdwg.mxu0
    %v670 = vpack.c.bf16 %v611, %v608
    %v671 = vpack.c.bf16 %v619, %v616
    %v672 = vpack.c.bf16 %v627, %v624
    %v673 = vpack.c.bf16 %v635, %v632
    %v674 = vpack.c.bf16 %v643, %v640
    %v675 = vpack.c.bf16 %v651, %v648
    %v676 = vpack.c.bf16 %v659, %v656
    %v677 = vpack.c.bf16 %v667, %v664
    %v686 = vunpack.c.l.b16 %v670
    %v687 = vunpack.c.h.b16 %v670
    %v688 = vunpack.c.l.b16 %v671
    %v689 = vunpack.c.h.b16 %v671
    %v690 = vunpack.c.l.b16 %v672
    %v691 = vunpack.c.h.b16 %v672
    %v692 = vunpack.c.l.b16 %v673
    %v693 = vunpack.c.h.b16 %v673
    %v694 = vunpack.c.l.b16 %v674
    %v695 = vunpack.c.h.b16 %v674
    %v696 = vunpack.c.l.b16 %v675
    %v697 = vunpack.c.h.b16 %v675
    %v698 = vunpack.c.l.b16 %v676
    %v699 = vunpack.c.h.b16 %v676
    %v700 = vunpack.c.l.b16 %v677
    %v701 = vunpack.c.h.b16 %v677
    %v702 = vpack.c.b16 %v686, %v686
    %v703 = vpack.c.b16 %v687, %v687
    %v704 = vpack.c.b16 %v688, %v688
    %v705 = vpack.c.b16 %v689, %v689
    %v706 = vpack.c.b16 %v690, %v690
    %v707 = vpack.c.b16 %v691, %v691
    %v708 = vpack.c.b16 %v692, %v692
    %v709 = vpack.c.b16 %v693, %v693
    %v710 = vpack.c.b16 %v694, %v694
    %v711 = vpack.c.b16 %v695, %v695
    %v712 = vpack.c.b16 %v696, %v696
    %v713 = vpack.c.b16 %v697, %v697
    %v714 = vpack.c.b16 %v698, %v698
    %v715 = vpack.c.b16 %v699, %v699
    %v716 = vpack.c.b16 %v700, %v700
    %v717 = vpack.c.b16 %v701, %v701
    %734 = vst [vmem:[%s7] sm:$0xf] %v702
    %735 = vst [vmem:[%s7 + $0x4] sm:$0xf] %v703
    %736 = vst [vmem:[%s7 + $0x8] sm:$0xf] %v704
    %737 = vst [vmem:[%s7 + $0xc] sm:$0xf] %v705
    %738 = vst [vmem:[%s7 + $0x10] sm:$0xf] %v706
    %739 = vst [vmem:[%s7 + $0x14] sm:$0xf] %v707
    %740 = vst [vmem:[%s7 + $0x18] sm:$0xf] %v708
    %741 = vst [vmem:[%s7 + $0x1c] sm:$0xf] %v709
    %742 = vst [vmem:[%s7 + $0x20] sm:$0xf] %v710
    %743 = vst [vmem:[%s7 + $0x24] sm:$0xf] %v711
    %744 = vst [vmem:[%s7 + $0x28] sm:$0xf] %v712
    %745 = vst [vmem:[%s7 + $0x2c] sm:$0xf] %v713
    %746 = vst [vmem:[%s7 + $0x30] sm:$0xf] %v714
    %747 = vst [vmem:[%s7 + $0x34] sm:$0xf] %v715
    %748 = vst [vmem:[%s7 + $0x38] sm:$0xf] %v716
    %749 = vst [vmem:[%s7 + $0x3c] sm:$0xf] %v717
    %v750 = vld [vmem:[%s5] sm:$0xf]
    %v751 = vld [vmem:[%s5 + $0x4] sm:$0xf]
    %v752 = vld [vmem:[%s5 + $0x8] sm:$0xf]
    %v753 = vld [vmem:[%s5 + $0xc] sm:$0xf]
    %v754 = vld [vmem:[%s5 + $0x10] sm:$0xf]
    %v755 = vld [vmem:[%s5 + $0x14] sm:$0xf]
    %v756 = vld [vmem:[%s5 + $0x18] sm:$0xf]
    %v757 = vld [vmem:[%s5 + $0x1c] sm:$0xf]
    %v758 = vld [vmem:[%s5 + $0x20] sm:$0xf]
    %v759 = vld [vmem:[%s5 + $0x24] sm:$0xf]
    %v760 = vld [vmem:[%s5 + $0x28] sm:$0xf]
    %v761 = vld [vmem:[%s5 + $0x2c] sm:$0xf]
    %v762 = vld [vmem:[%s5 + $0x30] sm:$0xf]
    %v763 = vld [vmem:[%s5 + $0x34] sm:$0xf]
    %v764 = vld [vmem:[%s5 + $0x38] sm:$0xf]
    %v765 = vld [vmem:[%s5 + $0x3c] sm:$0xf]
    %v766 = vld [vmem:[%s6] sm:$0x1]
    %v768 = vlaneseq
    %v769 = vshrl.u32 %v768, 7
    %v770 = vsub.s32 0, %v769
    %v771 = vrot.slane %v766, %v770
    %v789 = vunpack.c.l.b16 %v750
    %v790 = vunpack.c.l.b16 %v751
    %v791 = vunpack.c.l.b16 %v752
    %v792 = vunpack.c.l.b16 %v753
    %v793 = vunpack.c.l.b16 %v754
    %v794 = vunpack.c.l.b16 %v755
    %v795 = vunpack.c.l.b16 %v756
    %v796 = vunpack.c.l.b16 %v757
    %v797 = vunpack.c.l.b16 %v758
    %v798 = vunpack.c.l.b16 %v759
    %v799 = vunpack.c.l.b16 %v760
    %v800 = vunpack.c.l.b16 %v761
    %v801 = vunpack.c.l.b16 %v762
    %v802 = vunpack.c.l.b16 %v763
    %v803 = vunpack.c.l.b16 %v764
    %v804 = vunpack.c.l.b16 %v765
    %v805 = vpack.c.b16 %v790, %v789
    %v806 = vpack.c.b16 %v792, %v791
    %v807 = vpack.c.b16 %v794, %v793
    %v808 = vpack.c.b16 %v796, %v795
    %v809 = vpack.c.b16 %v798, %v797
    %v810 = vpack.c.b16 %v800, %v799
    %v811 = vpack.c.b16 %v802, %v801
    %v812 = vpack.c.b16 %v804, %v803
    %821 = vmatprep.subr.bf16.mxu0 0
    %822 = vmatpush1.bf16.msra.mxu0 %v805
    %823 = vmatprep.subr.bf16.mxu0 0
    %824 = vmatpush1.bf16.msra.mxu0 %v806
    %825 = vmatprep.subr.bf16.mxu0 0
    %826 = vmatpush1.bf16.msra.mxu0 %v807
    %827 = vmatprep.subr.bf16.mxu0 0
    %828 = vmatpush1.bf16.msra.mxu0 %v808
    %829 = vmatprep.subr.bf16.mxu0 0
    %830 = vmatpush1.bf16.msra.mxu0 %v809
    %831 = vmatprep.subr.bf16.mxu0 0
    %832 = vmatpush1.bf16.msra.mxu0 %v810
    %833 = vmatprep.subr.bf16.mxu0 0
    %834 = vmatpush1.bf16.msra.mxu0 %v811
    %835 = vmatprep.subr.bf16.mxu0 0
    %836 = vmatpush1.bf16.msra.mxu0 %v812
    %837 = vmatprep.subr.bf16.mxu0 0
    %838 = vmatpush1.bf16.msra.mxu0 0
    %839 = vmatprep.subr.bf16.mxu0 0
    %840 = vmatpush1.bf16.msra.mxu0 0
    %841 = vmatprep.subr.bf16.mxu0 0
    %842 = vmatpush1.bf16.msra.mxu0 0
    %843 = vmatprep.subr.bf16.mxu0 0
    %844 = vmatpush1.bf16.msra.mxu0 0
    %845 = vmatprep.subr.bf16.mxu0 0
    %846 = vmatpush1.bf16.msra.mxu0 0
    %847 = vmatprep.subr.bf16.mxu0 0
    %848 = vmatpush1.bf16.msra.mxu0 0
    %849 = vmatprep.subr.bf16.mxu0 0
    %850 = vmatpush1.bf16.msra.mxu0 0
    %851 = vmatprep.subr.bf16.mxu0 0
    %852 = vmatpush1.bf16.msra.mxu0 0
    %853 = vmatprep.mubr.bf16.mxu0 0
    %854 = vmatmul.mubr.bf16.gmra.mrb[0].mxu0 %v501
    %v855 = vpop.f32.mrb[0].mxu0
    %v856 = vadd.f32 %v771, %v855
    %v857 = vpop.f32.mrb[0].mxu0
    %v858 = vpop.f32.mrb[0].mxu0
    %v859 = vadd.f32 %v771, %v858
    %v860 = vpop.f32.mrb[0].mxu0
    %861 = vmatprep.mubr.bf16.mxu0 0
    %862 = vmatmul.mubr.bf16.gmra.mrb[0].mxu0 %v502
    %v863 = vpop.f32.mrb[0].mxu0
    %v864 = vadd.f32 %v771, %v863
    %v865 = vpop.f32.mrb[0].mxu0
    %v866 = vpop.f32.mrb[0].mxu0
    %v867 = vadd.f32 %v771, %v866
    %v868 = vpop.f32.mrb[0].mxu0
    %869 = vmatprep.mubr.bf16.mxu0 0
    %870 = vmatmul.mubr.bf16.gmra.mrb[0].mxu0 %v503
    %v871 = vpop.f32.mrb[0].mxu0
    %v872 = vadd.f32 %v771, %v871
    %v873 = vpop.f32.mrb[0].mxu0
    %v874 = vpop.f32.mrb[0].mxu0
    %v875 = vadd.f32 %v771, %v874
    %v876 = vpop.f32.mrb[0].mxu0
    %877 = vmatprep.mubr.bf16.mxu0 0
    %878 = vmatmul.mubr.bf16.gmra.mrb[0].mxu0 %v504
    %v879 = vpop.f32.mrb[0].mxu0
    %v880 = vadd.f32 %v771, %v879
    %v881 = vpop.f32.mrb[0].mxu0
    %v882 = vpop.f32.mrb[0].mxu0
    %v883 = vadd.f32 %v771, %v882
    %v884 = vpop.f32.mrb[0].mxu0
    %885 = vmatprep.mubr.bf16.mxu0 0
    %886 = vmatmul.mubr.bf16.gmra.mrb[0].mxu0 %v505
    %v887 = vpop.f32.mrb[0].mxu0
    %v888 = vadd.f32 %v771, %v887
    %v889 = vpop.f32.mrb[0].mxu0
    %v890 = vpop.f32.mrb[0].mxu0
    %v891 = vadd.f32 %v771, %v890
    %v892 = vpop.f32.mrb[0].mxu0
    %893 = vmatprep.mubr.bf16.mxu0 0
    %894 = vmatmul.mubr.bf16.gmra.mrb[0].mxu0 %v506
    %v895 = vpop.f32.mrb[0].mxu0
    %v896 = vadd.f32 %v771, %v895
    %v897 = vpop.f32.mrb[0].mxu0
    %v898 = vpop.f32.mrb[0].mxu0
    %v899 = vadd.f32 %v771, %v898
    %v900 = vpop.f32.mrb[0].mxu0
    %901 = vmatprep.mubr.bf16.mxu0 0
    %902 = vmatmul.mubr.bf16.gmra.mrb[0].mxu0 %v507
    %v903 = vpop.f32.mrb[0].mxu0
    %v904 = vadd.f32 %v771, %v903
    %v905 = vpop.f32.mrb[0].mxu0
    %v906 = vpop.f32.mrb[0].mxu0
    %v907 = vadd.f32 %v771, %v906
    %v908 = vpop.f32.mrb[0].mxu0
    %909 = vmatprep.mubr.bf16.mxu0 0
    %910 = vmatmul.mubr.bf16.gmra.mrb[0].mxu0 %v508
    %v911 = vpop.f32.mrb[0].mxu0
    %v912 = vadd.f32 %v771, %v911
    %v913 = vpop.f32.mrb[0].mxu0
    %v914 = vpop.f32.mrb[0].mxu0
    %v915 = vadd.f32 %v771, %v914
    %v916 = vpop.f32.mrb[0].mxu0
    %917 = vdwg.mxu0
    %918 = vst [vmem:[%s8] sm:$0xff] %v856
    %919 = vst [vmem:[%s8 + $0x8] sm:$0xff] %v859
    %920 = vst [vmem:[%s8 + $0x10] sm:$0xff] %v864
    %921 = vst [vmem:[%s8 + $0x18] sm:$0xff] %v867
    %922 = vst [vmem:[%s8 + $0x20] sm:$0xff] %v872
    %923 = vst [vmem:[%s8 + $0x28] sm:$0xff] %v875
    %924 = vst [vmem:[%s8 + $0x30] sm:$0xff] %v880
    %925 = vst [vmem:[%s8 + $0x38] sm:$0xff] %v883
    %926 = vst [vmem:[%s8 + $0x40] sm:$0xff] %v888
    %927 = vst [vmem:[%s8 + $0x48] sm:$0xff] %v891
    %928 = vst [vmem:[%s8 + $0x50] sm:$0xff] %v896
    %929 = vst [vmem:[%s8 + $0x58] sm:$0xff] %v899
    %930 = vst [vmem:[%s8 + $0x60] sm:$0xff] %v904
    %931 = vst [vmem:[%s8 + $0x68] sm:$0xff] %v907
    %932 = vst [vmem:[%s8 + $0x70] sm:$0xff] %v912
    %933 = vst [vmem:[%s8 + $0x78] sm:$0xff] %v915
  $region37: #{sage_forward.5} parent=0 // pred_fallthru
    _
  // Predicated region
  $region38: #{sage_forward.5} parent=0 // pred_check
    _
  $region39: #{sage_forward.5} parent=0 // pred_check_branch
    %935 = sbr.rel (0) target = $region41
  $region40: #{sage_forward.5} parent=0 // pred_region
    _
  $region41: #{sage_forward.5} parent=0 // pred_fallthru
    _
  // Predicated region
  $region42: #{sage_forward.5} parent=0 // pred_check
    _
  $region43: #{sage_forward.5} parent=0 // pred_check_branch
    %937 = sbr.rel (0) target = $region45
  $region44: #{sage_forward.5} parent=0 // pred_region
    _
  $region45: #{sage_forward.5} parent=0 // pred_fallthru
    _
  // Predicated region
  $region46: #{sage_forward.5} parent=0 // pred_check
    _
  $region47: #{sage_forward.5} parent=0 // pred_check_branch
    %939 = sbr.rel (0) target = $region49
  $region48: #{sage_forward.5} parent=0 // pred_region
    _
  $region49: #{sage_forward.5} parent=0 // pred_fallthru
    _
  // Predicated region
  $region50: #{sage_forward.5} parent=0 // pred_check
    _
  $region51: #{sage_forward.5} parent=0 // pred_check_branch
    %941 = sbr.rel (0) target = $region53
  $region52: #{sage_forward.5} parent=0 // pred_region
    _
  $region53: #{sage_forward.5} parent=0 // pred_fallthru
    _

</llo_original>
